<compile_context>
chip_gen: v7x
topology: tpu7x:2x2x1
jax: 0.10.0
libtpu: 0.0.40
codegen_flags: <defaults>
</compile_context>

<pallas_src>
import functools

import numpy as np
import jax
import jax.numpy as jnp
from jax.experimental import pallas as pl
from jax.experimental.pallas import tpu as pltpu

DELTA = 0.005        # Huber delta used by both AccLoss and GyroLoss
GRAV_Z = 9.80804     # gravity, g = [0, 0, 9.80804]


# ----------------------------------------------------------------------------
# small static helpers
# ----------------------------------------------------------------------------
def _lane_tile(n):
    """Pick a lane tile (multiple of 128) and the padded lane extent."""
    if n >= 1024:
        t = 512
    elif n >= 256:
        t = 256
    else:
        t = 128
    return t, ((n + t - 1) // t) * t


def _bit_reversal_perm(n):
    """Bit-reversal permutation so every product-tree level pairs contiguous halves."""
    bits = n.bit_length() - 1
    perm = np.empty(n, dtype=np.int32)
    for p in range(n):
        x, r = p, 0
        for _ in range(bits):
            r = (r << 1) | (x & 1)
            x >>= 1
        perm[p] = r
    return perm


# ----------------------------------------------------------------------------
# plain-JAX helpers shared by the epilogue and the reference
# ----------------------------------------------------------------------------
def _huber_sum(x, delta):
    ax = jnp.abs(x)
    return jnp.sum(jnp.where(ax <= delta, 0.5 * x * x, delta * (ax - 0.5 * delta)))


def _so3_log_flat(R9):
    """SO3.log on row-major (K, 9) rotations -> (K, 3)."""
    cos_ang = jnp.clip(0.5 * (R9[:, 0] + R9[:, 4] + R9[:, 8]) - 0.5, -1.0, 1.0)
    ang = jnp.arccos(cos_ang)
    small = ang < 1e-14
    factor = 0.5 * ang / jnp.where(small, 1.0, jnp.sin(ang))
    v_gen = factor[:, None] * jnp.stack(
        [R9[:, 7] - R9[:, 5], R9[:, 2] - R9[:, 6], R9[:, 3] - R9[:, 1]], axis=1)
    v_small = jnp.stack([R9[:, 7], R9[:, 2], R9[:, 3]], axis=1)
    return jnp.where(small[:, None], v_small, v_gen)


# ----------------------------------------------------------------------------
# AccLoss Pallas kernel
# ----------------------------------------------------------------------------
def _acc_loss_kernel(rots_ref, acc_ref, dtg_ref, out_ref, *, T, dt, delta):
    """One lane tile of AccLoss: writes per-lane Huber partial sums (1, tile)."""
    dt2 = dt * dt
    two_t = 2 * T
    # Combined double-integration weights (x1/x2/x3 terms folded together):
    #   front j <  T : (j + 0.5) * dt^2
    #   back  j >= T : (2T - 0.5 - j) * dt^2
    ti = jax.lax.broadcasted_iota(jnp.int32, (two_t, 1), 0)
    tf = ti.astype(jnp.float32)
    w = jnp.where(ti < T, tf + 0.5, (2.0 * T - 0.5) - tf) * dt2          # (2T, 1)

    a0 = acc_ref[0]                                                       # (2T, tile)
    a1 = acc_ref[1]
    a2 = acc_ref[2]

    h = jnp.zeros_like(dtg_ref[0:1, :])
    for d in range(3):
        # linear_acc component d = (R @ hat_acc)_d  (gravity already folded into dtg)
        la_d = (rots_ref[3 * d + 0] * a0
                + rots_ref[3 * d + 1] * a1
                + rots_ref[3 * d + 2] * a2)                               # (2T, tile)
        s_d = jnp.sum(w * la_d, axis=0, keepdims=True)                    # (1, tile)
        x_d = s_d - dtg_ref[d:d + 1, :]
        ax = jnp.abs(x_d)
        h = h + jnp.where(ax <= delta, 0.5 * x_d * x_d, delta * (ax - 0.5 * delta))
    out_ref[0] = h


def acc_loss_pallas(rots, hat_acc, ps, *, dt, T, delta=DELTA):
    B, N, _ = hat_acc.shape
    assert N % (2 * T) == 0
    two_t = 2 * T
    M = B * N // two_t

    rots_g = rots.astype(jnp.float32).reshape(M, two_t, 9)
    acc_g = hat_acc.astype(jnp.float32).reshape(M, two_t, 3)
    ps_g = ps.astype(jnp.float32).reshape(M, two_t, 3)
    diff_targ = ps_g[:, two_t - 1] - 2.0 * ps_g[:, T] + ps_g[:, 0]        # (M, 3)

    # Gravity folds out analytically: sum of the integration weights is exactly T^2 * dt^2,
    # so it becomes a constant shift of the lane-dense target vector (done here in XLA so
    # zero-padded lanes contribute exactly zero Huber loss in the kernel; no mask needed).
    w_total = float(T * T) * dt * dt
    g_vec = jnp.array([0.0, 0.0, GRAV_Z], jnp.float32)
    dtg_adj = diff_targ + g_vec[None, :] * w_total                        # (M, 3)

    tile, m_pad = _lane_tile(M)
    pad = m_pad - M
    # wrapper-side relayout: batch axis -> lanes, components -> leading, time -> sublanes
    rots_l = jnp.transpose(rots_g, (2, 1, 0))                             # (9, 2T, M)
    acc_l = jnp.transpose(acc_g, (2, 1, 0))                               # (3, 2T, M)
    dtg_l = dtg_adj.T                                                     # (3, M)
    if pad:
        rots_l = jnp.pad(rots_l, ((0, 0), (0, 0), (0, pad)))
        acc_l = jnp.pad(acc_l, ((0, 0), (0, 0), (0, pad)))
        dtg_l = jnp.pad(dtg_l, ((0, 0), (0, pad)))
    n_tiles = m_pad // tile

    partial = pl.pallas_call(
        functools.partial(_acc_loss_kernel, T=T, dt=dt, delta=delta),
        out_shape=jax.ShapeDtypeStruct((n_tiles, 1, tile), jnp.float32),
        grid=(n_tiles,),
        in_specs=[
            pl.BlockSpec((9, two_t, tile), lambda i: (0, 0, i)),
            pl.BlockSpec((3, two_t, tile), lambda i: (0, 0, i)),
            pl.BlockSpec((3, tile), lambda i: (0, i)),
        ],
        out_specs=pl.BlockSpec((1, 1, tile), lambda i: (i, 0, 0)),
        compiler_params=pltpu.CompilerParams(dimension_semantics=("parallel",)),
    )(rots_l, acc_l, dtg_l)
    return jnp.sum(partial) / (M * 3) * 10000.0


# ----------------------------------------------------------------------------
# GyroLoss Pallas kernel (fused SO3.exp + product tree + relative rotations)
# ----------------------------------------------------------------------------
def _gyro_kernel(phi_ref, cs_ref, rot_ref, rel1_ref, rel2_ref, *, n_samp):
    px = phi_ref[0]                                                       # (n_samp, tile)
    py = phi_ref[1]
    pz = phi_ref[2]
    co = cs_ref[0]
    si = cs_ref[1]

    # SO3.exp (Rodrigues) for all increments at once.
    t2 = px * px + py * py + pz * pz
    small = t2 < 1e-14                                                    # theta < 1e-7
    inv_t = jax.lax.rsqrt(jnp.where(small, 1.0, t2))
    ax = px * inv_t
    ay = py * inv_t
    az = pz * inv_t
    oc = 1.0 - co
    one = jnp.ones_like(px)
    gen = (co + oc * ax * ax, oc * ax * ay - si * az, oc * ax * az + si * ay,
           oc * ay * ax + si * az, co + oc * ay * ay, oc * ay * az - si * ax,
           oc * az * ax - si * ay, oc * az * ay + si * ax, co + oc * az * az)
    sml = (one, -pz, py,
           pz, one, -px,
           -py, px, one)
    R = [jnp.where(small, sml[i], gen[i]) for i in range(9)]              # 9 x (n_samp, tile)

    # Ordered product of consecutive increments: contiguous-halves tree (the time axis was
    # bit-reversal permuted in the wrapper, so every level multiplies first half x second half).
    n = n_samp
    while n > 2:
        hl = n // 2
        A = [r[:hl, :] for r in R]
        Bm = [r[hl:n, :] for r in R]
        R = [A[3 * i + 0] * Bm[0 + j] + A[3 * i + 1] * Bm[3 + j] + A[3 * i + 2] * Bm[6 + j]
             for i in range(3) for j in range(3)]
        n = hl
    # row 0 = hat_a (product of first T/2 increments), row 1 = hat_b (last T/2).

    rot = [rot_ref[k] for k in range(9)]                                  # 9 x (2, tile)
    # rel = hat^T @ rot (both chains at once)
    for j in range(3):
        for k in range(3):
            rel1_ref[3 * j + k] = (R[0 + j] * rot[0 + k]
                                   + R[3 + j] * rot[3 + k]
                                   + R[6 + j] * rot[6 + k])

    ha = [r[0:1, :] for r in R]
    hb = [r[1:2, :] for r in R]
    ra = [r[0:1, :] for r in rot]
    rb = [r[1:2, :] for r in rot]
    hat2 = [ha[3 * i + 0] * hb[0 + j] + ha[3 * i + 1] * hb[3 + j] + ha[3 * i + 2] * hb[6 + j]
            for i in range(3) for j in range(3)]
    rot2 = [ra[3 * i + 0] * rb[0 + j] + ra[3 * i + 1] * rb[3 + j] + ra[3 * i + 2] * rb[6 + j]
            for i in range(3) for j in range(3)]
    # rel2 = hat2^T @ rot2
    for j in range(3):
        for k in range(3):
            idx = 3 * j + k
            rel2_ref[idx:idx + 1, :] = (hat2[0 + j] * rot2[0 + k]
                                        + hat2[3 + j] * rot2[3 + k]
                                        + hat2[6 + j] * rot2[6 + k])


def gyro_loss_pallas(hat_gyro, rots, *, dt, T, delta=DELTA):
    B, N, _ = hat_gyro.shape
    Th = T // 2
    n_samp = 2 * Th
    # TODO(synk): the non-power-of-two T/2 sequential chain of GyroLoss is not implemented.
    assert Th >= 1 and (n_samp & (n_samp - 1)) == 0, "T/2 must be a power of two"
    assert N % n_samp == 0
    P = B * N // n_samp

    phi = (hat_gyro.astype(jnp.float32) * dt).reshape(P, n_samp, 3)
    theta = jnp.sqrt(jnp.sum(phi * phi, axis=-1))                         # (P, n_samp)
    cos_t = jnp.cos(theta)   # sin/cos precomputed in XLA (no guaranteed Mosaic lowering)
    sin_t = jnp.sin(theta)

    perm = _bit_reversal_perm(n_samp)
    tile, p_pad = _lane_tile(P)
    pad = p_pad - P

    phi_l = jnp.transpose(phi[:, perm, :], (2, 1, 0))                     # (3, n_samp, P)
    cs_l = jnp.stack([cos_t[:, perm].T, sin_t[:, perm].T], axis=0)        # (2, n_samp, P)
    rot_l = jnp.transpose(
        rots.astype(jnp.float32)[:, ::Th].reshape(P, 2, 9), (2, 1, 0))    # (9, 2, P)
    if pad:  # zero-padded lanes yield a zero relative-rotation matrix -> zero loss contribution
        phi_l = jnp.pad(phi_l, ((0, 0), (0, 0), (0, pad)))
        cs_l = jnp.pad(cs_l, ((0, 0), (0, 0), (0, pad)))
        rot_l = jnp.pad(rot_l, ((0, 0), (0, 0), (0, pad)))
    n_tiles = p_pad // tile

    rel1, rel2 = pl.pallas_call(
        functools.partial(_gyro_kernel, n_samp=n_samp),
        out_shape=(jax.ShapeDtypeStruct((9, 2, p_pad), jnp.float32),
                   jax.ShapeDtypeStruct((9, p_pad), jnp.float32)),
        grid=(n_tiles,),
        in_specs=[
            pl.BlockSpec((3, n_samp, tile), lambda i: (0, 0, i)),
            pl.BlockSpec((2, n_samp, tile), lambda i: (0, 0, i)),
            pl.BlockSpec((9, 2, tile), lambda i: (0, 0, i)),
        ],
        out_specs=(pl.BlockSpec((9, 2, tile), lambda i: (0, 0, i)),
                   pl.BlockSpec((9, tile), lambda i: (0, i))),
        compiler_params=pltpu.CompilerParams(dimension_semantics=("parallel",)),
    )(phi_l, cs_l, rot_l)

    # TODO(synk): SO3.log (arccos) + Huber epilogue stays in XLA: lax.acos has no reliable
    # Mosaic lowering; the data here is tiny and lane-dense.
    v1 = _so3_log_flat(jnp.transpose(rel1.reshape(9, 2 * p_pad)))
    v2 = _so3_log_flat(jnp.transpose(rel2))
    l1 = _huber_sum(v1, delta) / (2 * P * 3) * 100000.0
    l2 = _huber_sum(v2, delta) / (P * 3) * 100000.0
    return l1 + l2 / 2.0


# ----------------------------------------------------------------------------
# IMULoss forward
# ----------------------------------------------------------------------------
def imu_loss(pred, targ, params, *, dt, T):
    """Pallas-backed equivalent of IMULoss.forward (target='pos')."""
    _, _, hat_gyro, hat_acc = pred
    _, (_, rots_acc, rots_gyro, _, ps) = targ
    acc_l = acc_loss_pallas(rots_acc, hat_acc, ps, dt=dt, T=T)
    gyro_l = gyro_loss_pallas(hat_gyro, rots_gyro, dt=dt, T=T)
    p0, p1 = params[0], params[1]
    loss = 0.5 / p0 ** 2 * acc_l + jnp.log(1.0 + p0 ** 2)
    loss = loss + 0.5 / p1 ** 2 * gyro_l + jnp.log(1.0 + p1 ** 2)
    # TODO(synk): torch.cuda.synchronize()/wall-clock timing bookkeeping has no kernel equivalent.
    return loss


# ----------------------------------------------------------------------------
# pure-JAX reference (input construction + correctness check)
# ----------------------------------------------------------------------------
def _skew(v):
    x, y, z = v[:, 0], v[:, 1], v[:, 2]
    o = jnp.zeros_like(x)
    return jnp.stack([o, -z, y, z, o, -x, -y, x, o], axis=-1).reshape(-1, 3, 3)


def _so3_exp_ref(phi):
    theta = jnp.linalg.norm(phi, axis=-1, keepdims=True)
    small = theta < 1e-7
    axis = phi / jnp.where(small, 1.0, theta)
    c = jnp.cos(theta)[:, :, None]
    s = jnp.sin(theta)[:, :, None]
    eye = jnp.eye(3, dtype=phi.dtype)[None]
    r_gen = c * eye + (1.0 - c) * (axis[:, :, None] * axis[:, None, :]) + s * _skew(axis)
    r_small = eye + _skew(phi)
    return jnp.where(small[:, :, None], r_small, r_gen)


def _huber_mean_ref(x, delta=DELTA):
    ax = jnp.abs(x)
    return jnp.mean(jnp.where(ax <= delta, 0.5 * x * x, delta * (ax - 0.5 * delta)))


def _ref_imu_loss(pred, targ, params, dt, T):
    _, _, hat_gyro, hat_acc = pred
    _, (_, rots_a, rots_g, _, ps) = targ
    g = jnp.array([0.0, 0.0, GRAV_Z], jnp.float32)
    B, N, _ = hat_acc.shape
    G = N // (2 * T)
    la = (jnp.einsum('bnij,bnj->bni', rots_a, hat_acc) - g).reshape(B, G, 2 * T, 3)
    x1 = jnp.arange(1, T + 1)
    x2 = jnp.arange(1, T)
    x3 = jnp.arange(0, T)
    dt2 = dt * dt
    diff_hat = ((x1[:, None] * la[:, :, x1 - 1] * dt2).sum(axis=2)
                + ((T - x2)[:, None] * la[:, :, T + x2 - 1] * dt2).sum(axis=2)
                + ((la[:, :, T + x3] - la[:, :, x3]) * dt2).sum(axis=2) / 2.0)
    psr = ps.reshape(B, G, 2 * T, 3)
    diff_targ = psr[:, :, -1] - psr[:, :, T] - (psr[:, :, T] - psr[:, :, 0])
    acc_l = _huber_mean_ref(diff_hat - diff_targ) * 10000.0

    Th = T // 2
    hat_rots = _so3_exp_ref((hat_gyro * dt).reshape(-1, 3)).reshape(B, N, 3, 3)
    rg = rots_g[:, ::Th]
    for _ in range(int(np.log2(Th))):
        hat_rots = jnp.einsum('bnij,bnjk->bnik', hat_rots[:, ::2], hat_rots[:, 1::2])
    d1 = _so3_log_flat(jnp.einsum('bnij,bnik->bnjk', hat_rots, rg).reshape(-1, 9))
    l1 = _huber_mean_ref(d1) * 100000.0
    hat2 = jnp.einsum('bnij,bnjk->bnik', hat_rots[:, ::2], hat_rots[:, 1::2])
    rg2 = jnp.einsum('bnij,bnjk->bnik', rg[:, ::2], rg[:, 1::2])
    d2 = _so3_log_flat(jnp.einsum('bnij,bnik->bnjk', hat2, rg2).reshape(-1, 9))
    l2 = _huber_mean_ref(d2) * 100000.0
    gyro_l = l1 + l2 / 2.0

    p0, p1 = params[0], params[1]
    return (0.5 / p0 ** 2 * acc_l + jnp.log(1.0 + p0 ** 2)
            + 0.5 / p1 ** 2 * gyro_l + jnp.log(1.0 + p1 ** 2))


if __name__ == "__main__":
    B, N, T = 2, 32, 8           # small shapes: n_samples divisible by 2*T and by T
    DT = 1.0 / 200.0
    key = jax.random.PRNGKey(0)
    k1, k2, k3, k4 = jax.random.split(key, 4)
    hat_acc = jax.random.normal(k1, (B, N, 3), jnp.float32)           # predicted body accel
    hat_gyro = 0.5 * jax.random.normal(k2, (B, N, 3), jnp.float32)    # predicted angular rate
    ps = 0.01 * jax.random.normal(k3, (B, N, 3), jnp.float32)         # target positions
    rv = 0.3 * jax.random.normal(k4, (B, N, 3), jnp.float32)
    rots = _so3_exp_ref(rv.reshape(-1, 3)).reshape(B, N, 3, 3)        # valid target rotations
    params = jnp.ones((2,), jnp.float32)                              # torch.nn.Parameter(torch.ones(2))

    pred = (None, None, hat_gyro, hat_acc)
    targ = (None, (None, rots, rots, None, ps))

    run = jax.jit(functools.partial(imu_loss, dt=DT, T=T))
    loss = jax.block_until_ready(run(pred, targ, params))
    ref = jax.block_until_ready(_ref_imu_loss(pred, targ, params, DT, T))

    assert bool(jnp.isfinite(loss)), "loss is not finite"
    assert abs(float(loss) - float(ref)) <= 2e-3 * max(1.0, abs(float(ref))), (float(loss), float(ref))
    print("KERNEL_OK")
</pallas_src>

<mosaic_0001>
module attributes {stable_mosaic.version = 11 : i64} {
  func.func @_acc_loss_kernel(%arg0: i32, %arg1: memref<9x16x128xf32, #tpu.memory_space<vmem>>, %arg2: memref<3x16x128xf32, #tpu.memory_space<vmem>>, %arg3: memref<3x128xf32, #tpu.memory_space<vmem>>, %arg4: memref<1x1x128xf32, #tpu.memory_space<vmem>>) attributes {dimension_semantics = [#tpu.dimension_semantics<parallel>], iteration_bounds = array<i64: 1>, scalar_prefetch = 0 : i64, scratch_operands = 0 : i64, tpu.core_type = #tpu.core_type<tc>, window_params = [{transform_indices = @transform_0, window_bounds = array<i64: 9, 16, 128>}, {transform_indices = @transform_1, window_bounds = array<i64: 3, 16, 128>}, {transform_indices = @transform_2, window_bounds = array<i64: 3, 128>}, {transform_indices = @transform_3, window_bounds = array<i64: 1, 1, 128>}]} {
    %0 = tpu.iota {dimensions = array<i32: 0>} : vector<16x1xi32>
    %1 = arith.sitofp %0 : vector<16x1xi32> to vector<16x1xf32>
    %c8_i32 = arith.constant 8 : i32
    %2 = vector.broadcast %c8_i32 : i32 to vector<16x1xi32>
    %3 = arith.cmpi slt, %0, %2 : vector<16x1xi32>
    %cst = arith.constant 5.000000e-01 : f32
    %4 = vector.broadcast %cst : f32 to vector<16x1xf32>
    %5 = arith.addf %1, %4 : vector<16x1xf32>
    %cst_0 = arith.constant 1.550000e+01 : f32
    %6 = vector.broadcast %cst_0 : f32 to vector<16x1xf32>
    %7 = arith.subf %6, %1 : vector<16x1xf32>
    %8 = arith.select %3, %5, %7 : vector<16x1xi1>, vector<16x1xf32>
    %cst_1 = arith.constant 2.500000e-05 : f32
    %9 = vector.broadcast %cst_1 : f32 to vector<16x1xf32>
    %10 = arith.mulf %8, %9 : vector<16x1xf32>
    %c0 = arith.constant 0 : index
    %c0_2 = arith.constant 0 : index
    %c0_3 = arith.constant 0 : index
    %11 = vector.load %arg2[%c0, %c0_2, %c0_3] : memref<3x16x128xf32, #tpu.memory_space<vmem>>, vector<1x16x128xf32>
    %12 = vector.shape_cast %11 : vector<1x16x128xf32> to vector<16x128xf32>
    %c1 = arith.constant 1 : index
    %c0_4 = arith.constant 0 : index
    %c0_5 = arith.constant 0 : index
    %13 = vector.load %arg2[%c1, %c0_4, %c0_5] : memref<3x16x128xf32, #tpu.memory_space<vmem>>, vector<1x16x128xf32>
    %14 = vector.shape_cast %13 : vector<1x16x128xf32> to vector<16x128xf32>
    %c2 = arith.constant 2 : index
    %c0_6 = arith.constant 0 : index
    %c0_7 = arith.constant 0 : index
    %15 = vector.load %arg2[%c2, %c0_6, %c0_7] : memref<3x16x128xf32, #tpu.memory_space<vmem>>, vector<1x16x128xf32>
    %16 = vector.shape_cast %15 : vector<1x16x128xf32> to vector<16x128xf32>
    %cst_8 = arith.constant 0.000000e+00 : f32
    %17 = vector.broadcast %cst_8 : f32 to vector<1x128xf32>
    %c0_9 = arith.constant 0 : index
    %c0_10 = arith.constant 0 : index
    %c0_11 = arith.constant 0 : index
    %18 = vector.load %arg1[%c0_9, %c0_10, %c0_11] : memref<9x16x128xf32, #tpu.memory_space<vmem>>, vector<1x16x128xf32>
    %19 = vector.shape_cast %18 : vector<1x16x128xf32> to vector<16x128xf32>
    %20 = arith.mulf %19, %12 : vector<16x128xf32>
    %c1_12 = arith.constant 1 : index
    %c0_13 = arith.constant 0 : index
    %c0_14 = arith.constant 0 : index
    %21 = vector.load %arg1[%c1_12, %c0_13, %c0_14] : memref<9x16x128xf32, #tpu.memory_space<vmem>>, vector<1x16x128xf32>
    %22 = vector.shape_cast %21 : vector<1x16x128xf32> to vector<16x128xf32>
    %23 = arith.mulf %22, %14 : vector<16x128xf32>
    %24 = arith.addf %20, %23 : vector<16x128xf32>
    %c2_15 = arith.constant 2 : index
    %c0_16 = arith.constant 0 : index
    %c0_17 = arith.constant 0 : index
    %25 = vector.load %arg1[%c2_15, %c0_16, %c0_17] : memref<9x16x128xf32, #tpu.memory_space<vmem>>, vector<1x16x128xf32>
    %26 = vector.shape_cast %25 : vector<1x16x128xf32> to vector<16x128xf32>
    %27 = arith.mulf %26, %16 : vector<16x128xf32>
    %28 = arith.addf %24, %27 : vector<16x128xf32>
    %29 = vector.broadcast %10 : vector<16x1xf32> to vector<16x128xf32>
    %30 = arith.mulf %29, %28 : vector<16x128xf32>
    %cst_18 = arith.constant dense<0.000000e+00> : vector<128xf32>
    %31 = vector.multi_reduction <add>, %30, %cst_18 [0] : vector<16x128xf32> to vector<128xf32>
    %32 = vector.shape_cast %31 : vector<128xf32> to vector<1x128xf32>
    %c0_19 = arith.constant 0 : index
    %c0_20 = arith.constant 0 : index
    %33 = vector.load %arg3[%c0_19, %c0_20] : memref<3x128xf32, #tpu.memory_space<vmem>>, vector<1x128xf32>
    %34 = arith.subf %32, %33 : vector<1x128xf32>
    %35 = math.absf %34 : vector<1x128xf32>
    %cst_21 = arith.constant 5.000000e-03 : f32
    %36 = vector.broadcast %cst_21 : f32 to vector<1x128xf32>
    %37 = arith.cmpf ole, %35, %36 : vector<1x128xf32>
    %cst_22 = arith.constant 5.000000e-01 : f32
    %38 = vector.broadcast %cst_22 : f32 to vector<1x128xf32>
    %39 = arith.mulf %38, %34 : vector<1x128xf32>
    %40 = arith.mulf %39, %34 : vector<1x128xf32>
    %cst_23 = arith.constant 2.500000e-03 : f32
    %41 = vector.broadcast %cst_23 : f32 to vector<1x128xf32>
    %42 = arith.subf %35, %41 : vector<1x128xf32>
    %cst_24 = arith.constant 5.000000e-03 : f32
    %43 = vector.broadcast %cst_24 : f32 to vector<1x128xf32>
    %44 = arith.mulf %43, %42 : vector<1x128xf32>
    %45 = arith.select %37, %40, %44 : vector<1x128xi1>, vector<1x128xf32>
    %46 = arith.addf %17, %45 : vector<1x128xf32>
    %c3 = arith.constant 3 : index
    %c0_25 = arith.constant 0 : index
    %c0_26 = arith.constant 0 : index
    %47 = vector.load %arg1[%c3, %c0_25, %c0_26] : memref<9x16x128xf32, #tpu.memory_space<vmem>>, vector<1x16x128xf32>
    %48 = vector.shape_cast %47 : vector<1x16x128xf32> to vector<16x128xf32>
    %49 = arith.mulf %48, %12 : vector<16x128xf32>
    %c4 = arith.constant 4 : index
    %c0_27 = arith.constant 0 : index
    %c0_28 = arith.constant 0 : index
    %50 = vector.load %arg1[%c4, %c0_27, %c0_28] : memref<9x16x128xf32, #tpu.memory_space<vmem>>, vector<1x16x128xf32>
    %51 = vector.shape_cast %50 : vector<1x16x128xf32> to vector<16x128xf32>
    %52 = arith.mulf %51, %14 : vector<16x128xf32>
    %53 = arith.addf %49, %52 : vector<16x128xf32>
    %c5 = arith.constant 5 : index
    %c0_29 = arith.constant 0 : index
    %c0_30 = arith.constant 0 : index
    %54 = vector.load %arg1[%c5, %c0_29, %c0_30] : memref<9x16x128xf32, #tpu.memory_space<vmem>>, vector<1x16x128xf32>
    %55 = vector.shape_cast %54 : vector<1x16x128xf32> to vector<16x128xf32>
    %56 = arith.mulf %55, %16 : vector<16x128xf32>
    %57 = arith.addf %53, %56 : vector<16x128xf32>
    %58 = vector.broadcast %10 : vector<16x1xf32> to vector<16x128xf32>
    %59 = arith.mulf %58, %57 : vector<16x128xf32>
    %cst_31 = arith.constant dense<0.000000e+00> : vector<128xf32>
    %60 = vector.multi_reduction <add>, %59, %cst_31 [0] : vector<16x128xf32> to vector<128xf32>
    %61 = vector.shape_cast %60 : vector<128xf32> to vector<1x128xf32>
    %c1_32 = arith.constant 1 : index
    %c0_33 = arith.constant 0 : index
    %62 = vector.load %arg3[%c1_32, %c0_33] : memref<3x128xf32, #tpu.memory_space<vmem>>, vector<1x128xf32>
    %63 = arith.subf %61, %62 : vector<1x128xf32>
    %64 = math.absf %63 : vector<1x128xf32>
    %cst_34 = arith.constant 5.000000e-03 : f32
    %65 = vector.broadcast %cst_34 : f32 to vector<1x128xf32>
    %66 = arith.cmpf ole, %64, %65 : vector<1x128xf32>
    %cst_35 = arith.constant 5.000000e-01 : f32
    %67 = vector.broadcast %cst_35 : f32 to vector<1x128xf32>
    %68 = arith.mulf %67, %63 : vector<1x128xf32>
    %69 = arith.mulf %68, %63 : vector<1x128xf32>
    %cst_36 = arith.constant 2.500000e-03 : f32
    %70 = vector.broadcast %cst_36 : f32 to vector<1x128xf32>
    %71 = arith.subf %64, %70 : vector<1x128xf32>
    %cst_37 = arith.constant 5.000000e-03 : f32
    %72 = vector.broadcast %cst_37 : f32 to vector<1x128xf32>
    %73 = arith.mulf %72, %71 : vector<1x128xf32>
    %74 = arith.select %66, %69, %73 : vector<1x128xi1>, vector<1x128xf32>
    %75 = arith.addf %46, %74 : vector<1x128xf32>
    %c6 = arith.constant 6 : index
    %c0_38 = arith.constant 0 : index
    %c0_39 = arith.constant 0 : index
    %76 = vector.load %arg1[%c6, %c0_38, %c0_39] : memref<9x16x128xf32, #tpu.memory_space<vmem>>, vector<1x16x128xf32>
    %77 = vector.shape_cast %76 : vector<1x16x128xf32> to vector<16x128xf32>
    %78 = arith.mulf %77, %12 : vector<16x128xf32>
    %c7 = arith.constant 7 : index
    %c0_40 = arith.constant 0 : index
    %c0_41 = arith.constant 0 : index
    %79 = vector.load %arg1[%c7, %c0_40, %c0_41] : memref<9x16x128xf32, #tpu.memory_space<vmem>>, vector<1x16x128xf32>
    %80 = vector.shape_cast %79 : vector<1x16x128xf32> to vector<16x128xf32>
    %81 = arith.mulf %80, %14 : vector<16x128xf32>
    %82 = arith.addf %78, %81 : vector<16x128xf32>
    %c8 = arith.constant 8 : index
    %c0_42 = arith.constant 0 : index
    %c0_43 = arith.constant 0 : index
    %83 = vector.load %arg1[%c8, %c0_42, %c0_43] : memref<9x16x128xf32, #tpu.memory_space<vmem>>, vector<1x16x128xf32>
    %84 = vector.shape_cast %83 : vector<1x16x128xf32> to vector<16x128xf32>
    %85 = arith.mulf %84, %16 : vector<16x128xf32>
    %86 = arith.addf %82, %85 : vector<16x128xf32>
    %87 = vector.broadcast %10 : vector<16x1xf32> to vector<16x128xf32>
    %88 = arith.mulf %87, %86 : vector<16x128xf32>
    %cst_44 = arith.constant dense<0.000000e+00> : vector<128xf32>
    %89 = vector.multi_reduction <add>, %88, %cst_44 [0] : vector<16x128xf32> to vector<128xf32>
    %90 = vector.shape_cast %89 : vector<128xf32> to vector<1x128xf32>
    %c2_45 = arith.constant 2 : index
    %c0_46 = arith.constant 0 : index
    %91 = vector.load %arg3[%c2_45, %c0_46] : memref<3x128xf32, #tpu.memory_space<vmem>>, vector<1x128xf32>
    %92 = arith.subf %90, %91 : vector<1x128xf32>
    %93 = math.absf %92 : vector<1x128xf32>
    %cst_47 = arith.constant 5.000000e-03 : f32
    %94 = vector.broadcast %cst_47 : f32 to vector<1x128xf32>
    %95 = arith.cmpf ole, %93, %94 : vector<1x128xf32>
    %cst_48 = arith.constant 5.000000e-01 : f32
    %96 = vector.broadcast %cst_48 : f32 to vector<1x128xf32>
    %97 = arith.mulf %96, %92 : vector<1x128xf32>
    %98 = arith.mulf %97, %92 : vector<1x128xf32>
    %cst_49 = arith.constant 2.500000e-03 : f32
    %99 = vector.broadcast %cst_49 : f32 to vector<1x128xf32>
    %100 = arith.subf %93, %99 : vector<1x128xf32>
    %cst_50 = arith.constant 5.000000e-03 : f32
    %101 = vector.broadcast %cst_50 : f32 to vector<1x128xf32>
    %102 = arith.mulf %101, %100 : vector<1x128xf32>
    %103 = arith.select %95, %98, %102 : vector<1x128xi1>, vector<1x128xf32>
    %104 = arith.addf %75, %103 : vector<1x128xf32>
    %c0_51 = arith.constant 0 : index
    %c0_52 = arith.constant 0 : index
    %c0_53 = arith.constant 0 : index
    %105 = vector.load %arg4[%c0_51, %c0_52, %c0_53] : memref<1x1x128xf32, #tpu.memory_space<vmem>>, vector<1x1x128xf32>
    %106 = vector.shape_cast %105 : vector<1x1x128xf32> to vector<1x128xf32>
    %107 = vector.shape_cast %104 : vector<1x128xf32> to vector<1x1x128xf32>
    tpu.vector_store %arg4[%c0_51, %c0_52, %c0_53], %107 {strides = array<i32>} : memref<1x1x128xf32, #tpu.memory_space<vmem>>, vector<1x1x128xf32>,
    return
  }
  func.func @transform_0(%arg0: i32) -> (i32, i32, i32) {
    %c0_i32 = arith.constant 0 : i32
    %c0_i32_0 = arith.constant 0 : i32
    %c0_i32_1 = arith.constant 0 : i32
    return %c0_i32, %c0_i32_0, %arg0 : i32, i32, i32
  }
  func.func @transform_1(%arg0: i32) -> (i32, i32, i32) {
    %c0_i32 = arith.constant 0 : i32
    %c0_i32_0 = arith.constant 0 : i32
    %c0_i32_1 = arith.constant 0 : i32
    return %c0_i32, %c0_i32_0, %arg0 : i32, i32, i32
  }
  func.func @transform_2(%arg0: i32) -> (i32, i32) {
    %c0_i32 = arith.constant 0 : i32
    %c0_i32_0 = arith.constant 0 : i32
    return %c0_i32, %arg0 : i32, i32
  }
  func.func @transform_3(%arg0: i32) -> (i32, i32, i32) {
    %c0_i32 = arith.constant 0 : i32
    %c0_i32_0 = arith.constant 0 : i32
    %c0_i32_1 = arith.constant 0 : i32
    return %arg0, %c0_i32, %c0_i32_0 : i32, i32, i32
  }
}

module attributes {stable_mosaic.version = 11 : i64} {
  func.func @_gyro_kernel(%arg0: i32, %arg1: memref<3x8x128xf32, #tpu.memory_space<vmem>>, %arg2: memref<2x8x128xf32, #tpu.memory_space<vmem>>, %arg3: memref<9x2x128xf32, #tpu.memory_space<vmem>>, %arg4: memref<9x2x128xf32, #tpu.memory_space<vmem>>, %arg5: memref<9x128xf32, #tpu.memory_space<vmem>>) attributes {dimension_semantics = [#tpu.dimension_semantics<parallel>], iteration_bounds = array<i64: 1>, scalar_prefetch = 0 : i64, scratch_operands = 0 : i64, tpu.core_type = #tpu.core_type<tc>, window_params = [{transform_indices = @transform_0, window_bounds = array<i64: 3, 8, 128>}, {transform_indices = @transform_1, window_bounds = array<i64: 2, 8, 128>}, {transform_indices = @transform_2, window_bounds = array<i64: 9, 2, 128>}, {transform_indices = @transform_3, window_bounds = array<i64: 9, 2, 128>}, {transform_indices = @transform_4, window_bounds = array<i64: 9, 128>}]} {
    %c0 = arith.constant 0 : index
    %c0_0 = arith.constant 0 : index
    %c0_1 = arith.constant 0 : index
    %0 = vector.load %arg1[%c0, %c0_0, %c0_1] : memref<3x8x128xf32, #tpu.memory_space<vmem>>, vector<1x8x128xf32>
    %1 = vector.shape_cast %0 : vector<1x8x128xf32> to vector<8x128xf32>
    %c1 = arith.constant 1 : index
    %c0_2 = arith.constant 0 : index
    %c0_3 = arith.constant 0 : index
    %2 = vector.load %arg1[%c1, %c0_2, %c0_3] : memref<3x8x128xf32, #tpu.memory_space<vmem>>, vector<1x8x128xf32>
    %3 = vector.shape_cast %2 : vector<1x8x128xf32> to vector<8x128xf32>
    %c2 = arith.constant 2 : index
    %c0_4 = arith.constant 0 : index
    %c0_5 = arith.constant 0 : index
    %4 = vector.load %arg1[%c2, %c0_4, %c0_5] : memref<3x8x128xf32, #tpu.memory_space<vmem>>, vector<1x8x128xf32>
    %5 = vector.shape_cast %4 : vector<1x8x128xf32> to vector<8x128xf32>
    %c0_6 = arith.constant 0 : index
    %c0_7 = arith.constant 0 : index
    %c0_8 = arith.constant 0 : index
    %6 = vector.load %arg2[%c0_6, %c0_7, %c0_8] : memref<2x8x128xf32, #tpu.memory_space<vmem>>, vector<1x8x128xf32>
    %7 = vector.shape_cast %6 : vector<1x8x128xf32> to vector<8x128xf32>
    %c1_9 = arith.constant 1 : index
    %c0_10 = arith.constant 0 : index
    %c0_11 = arith.constant 0 : index
    %8 = vector.load %arg2[%c1_9, %c0_10, %c0_11] : memref<2x8x128xf32, #tpu.memory_space<vmem>>, vector<1x8x128xf32>
    %9 = vector.shape_cast %8 : vector<1x8x128xf32> to vector<8x128xf32>
    %10 = arith.mulf %1, %1 : vector<8x128xf32>
    %11 = arith.mulf %3, %3 : vector<8x128xf32>
    %12 = arith.addf %10, %11 : vector<8x128xf32>
    %13 = arith.mulf %5, %5 : vector<8x128xf32>
    %14 = arith.addf %12, %13 : vector<8x128xf32>
    %cst = arith.constant 9.99999982E-15 : f32
    %15 = vector.broadcast %cst : f32 to vector<8x128xf32>
    %16 = arith.cmpf olt, %14, %15 : vector<8x128xf32>
    %cst_12 = arith.constant 1.000000e+00 : f32
    %17 = vector.broadcast %cst_12 : f32 to vector<8x128xf32>
    %18 = arith.select %16, %17, %14 : vector<8x128xi1>, vector<8x128xf32>
    %19 = math.rsqrt %18 : vector<8x128xf32>
    %20 = arith.mulf %1, %19 : vector<8x128xf32>
    %21 = arith.mulf %3, %19 : vector<8x128xf32>
    %22 = arith.mulf %5, %19 : vector<8x128xf32>
    %cst_13 = arith.constant 1.000000e+00 : f32
    %23 = vector.broadcast %cst_13 : f32 to vector<8x128xf32>
    %24 = arith.subf %23, %7 : vector<8x128xf32>
    %cst_14 = arith.constant 1.000000e+00 : f32
    %25 = vector.broadcast %cst_14 : f32 to vector<8x128xf32>
    %26 = arith.mulf %24, %20 : vector<8x128xf32>
    %27 = arith.mulf %26, %20 : vector<8x128xf32>
    %28 = arith.addf %7, %27 : vector<8x128xf32>
    %29 = arith.mulf %24, %20 : vector<8x128xf32>
    %30 = arith.mulf %29, %21 : vector<8x128xf32>
    %31 = arith.mulf %9, %22 : vector<8x128xf32>
    %32 = arith.subf %30, %31 : vector<8x128xf32>
    %33 = arith.mulf %24, %20 : vector<8x128xf32>
    %34 = arith.mulf %33, %22 : vector<8x128xf32>
    %35 = arith.mulf %9, %21 : vector<8x128xf32>
    %36 = arith.addf %34, %35 : vector<8x128xf32>
    %37 = arith.mulf %24, %21 : vector<8x128xf32>
    %38 = arith.mulf %37, %20 : vector<8x128xf32>
    %39 = arith.mulf %9, %22 : vector<8x128xf32>
    %40 = arith.addf %38, %39 : vector<8x128xf32>
    %41 = arith.mulf %24, %21 : vector<8x128xf32>
    %42 = arith.mulf %41, %21 : vector<8x128xf32>
    %43 = arith.addf %7, %42 : vector<8x128xf32>
    %44 = arith.mulf %24, %21 : vector<8x128xf32>
    %45 = arith.mulf %44, %22 : vector<8x128xf32>
    %46 = arith.mulf %9, %20 : vector<8x128xf32>
    %47 = arith.subf %45, %46 : vector<8x128xf32>
    %48 = arith.mulf %24, %22 : vector<8x128xf32>
    %49 = arith.mulf %48, %20 : vector<8x128xf32>
    %50 = arith.mulf %9, %21 : vector<8x128xf32>
    %51 = arith.subf %49, %50 : vector<8x128xf32>
    %52 = arith.mulf %24, %22 : vector<8x128xf32>
    %53 = arith.mulf %52, %21 : vector<8x128xf32>
    %54 = arith.mulf %9, %20 : vector<8x128xf32>
    %55 = arith.addf %53, %54 : vector<8x128xf32>
    %56 = arith.mulf %24, %22 : vector<8x128xf32>
    %57 = arith.mulf %56, %22 : vector<8x128xf32>
    %58 = arith.addf %7, %57 : vector<8x128xf32>
    %cst_15 = arith.constant 0.000000e+00 : f32
    %59 = vector.broadcast %cst_15 : f32 to vector<8x128xf32>
    %60 = arith.subf %59, %5 : vector<8x128xf32>
    %cst_16 = arith.constant 0.000000e+00 : f32
    %61 = vector.broadcast %cst_16 : f32 to vector<8x128xf32>
    %62 = arith.subf %61, %1 : vector<8x128xf32>
    %cst_17 = arith.constant 0.000000e+00 : f32
    %63 = vector.broadcast %cst_17 : f32 to vector<8x128xf32>
    %64 = arith.subf %63, %3 : vector<8x128xf32>
    %65 = arith.select %16, %25, %28 : vector<8x128xi1>, vector<8x128xf32>
    %66 = arith.select %16, %60, %32 : vector<8x128xi1>, vector<8x128xf32>
    %67 = arith.select %16, %3, %36 : vector<8x128xi1>, vector<8x128xf32>
    %68 = arith.select %16, %5, %40 : vector<8x128xi1>, vector<8x128xf32>
    %69 = arith.select %16, %25, %43 : vector<8x128xi1>, vector<8x128xf32>
    %70 = arith.select %16, %62, %47 : vector<8x128xi1>, vector<8x128xf32>
    %71 = arith.select %16, %64, %51 : vector<8x128xi1>, vector<8x128xf32>
    %72 = arith.select %16, %1, %55 : vector<8x128xi1>, vector<8x128xf32>
    %73 = arith.select %16, %25, %58 : vector<8x128xi1>, vector<8x128xf32>
    %74 = vector.extract_strided_slice %65 {offsets = [0, 0], sizes = [4, 128], strides = [1, 1]} : vector<8x128xf32> to vector<4x128xf32>
    %75 = vector.extract_strided_slice %66 {offsets = [0, 0], sizes = [4, 128], strides = [1, 1]} : vector<8x128xf32> to vector<4x128xf32>
    %76 = vector.extract_strided_slice %67 {offsets = [0, 0], sizes = [4, 128], strides = [1, 1]} : vector<8x128xf32> to vector<4x128xf32>
    %77 = vector.extract_strided_slice %68 {offsets = [0, 0], sizes = [4, 128], strides = [1, 1]} : vector<8x128xf32> to vector<4x128xf32>
    %78 = vector.extract_strided_slice %69 {offsets = [0, 0], sizes = [4, 128], strides = [1, 1]} : vector<8x128xf32> to vector<4x128xf32>
    %79 = vector.extract_strided_slice %70 {offsets = [0, 0], sizes = [4, 128], strides = [1, 1]} : vector<8x128xf32> to vector<4x128xf32>
    %80 = vector.extract_strided_slice %71 {offsets = [0, 0], sizes = [4, 128], strides = [1, 1]} : vector<8x128xf32> to vector<4x128xf32>
    %81 = vector.extract_strided_slice %72 {offsets = [0, 0], sizes = [4, 128], strides = [1, 1]} : vector<8x128xf32> to vector<4x128xf32>
    %82 = vector.extract_strided_slice %73 {offsets = [0, 0], sizes = [4, 128], strides = [1, 1]} : vector<8x128xf32> to vector<4x128xf32>
    %83 = vector.extract_strided_slice %65 {offsets = [4, 0], sizes = [4, 128], strides = [1, 1]} : vector<8x128xf32> to vector<4x128xf32>
    %84 = vector.extract_strided_slice %66 {offsets = [4, 0], sizes = [4, 128], strides = [1, 1]} : vector<8x128xf32> to vector<4x128xf32>
    %85 = vector.extract_strided_slice %67 {offsets = [4, 0], sizes = [4, 128], strides = [1, 1]} : vector<8x128xf32> to vector<4x128xf32>
    %86 = vector.extract_strided_slice %68 {offsets = [4, 0], sizes = [4, 128], strides = [1, 1]} : vector<8x128xf32> to vector<4x128xf32>
    %87 = vector.extract_strided_slice %69 {offsets = [4, 0], sizes = [4, 128], strides = [1, 1]} : vector<8x128xf32> to vector<4x128xf32>
    %88 = vector.extract_strided_slice %70 {offsets = [4, 0], sizes = [4, 128], strides = [1, 1]} : vector<8x128xf32> to vector<4x128xf32>
    %89 = vector.extract_strided_slice %71 {offsets = [4, 0], sizes = [4, 128], strides = [1, 1]} : vector<8x128xf32> to vector<4x128xf32>
    %90 = vector.extract_strided_slice %72 {offsets = [4, 0], sizes = [4, 128], strides = [1, 1]} : vector<8x128xf32> to vector<4x128xf32>
    %91 = vector.extract_strided_slice %73 {offsets = [4, 0], sizes = [4, 128], strides = [1, 1]} : vector<8x128xf32> to vector<4x128xf32>
    %92 = arith.mulf %74, %83 : vector<4x128xf32>
    %93 = arith.mulf %75, %86 : vector<4x128xf32>
    %94 = arith.addf %92, %93 : vector<4x128xf32>
    %95 = arith.mulf %76, %89 : vector<4x128xf32>
    %96 = arith.addf %94, %95 : vector<4x128xf32>
    %97 = arith.mulf %74, %84 : vector<4x128xf32>
    %98 = arith.mulf %75, %87 : vector<4x128xf32>
    %99 = arith.addf %97, %98 : vector<4x128xf32>
    %100 = arith.mulf %76, %90 : vector<4x128xf32>
    %101 = arith.addf %99, %100 : vector<4x128xf32>
    %102 = arith.mulf %74, %85 : vector<4x128xf32>
    %103 = arith.mulf %75, %88 : vector<4x128xf32>
    %104 = arith.addf %102, %103 : vector<4x128xf32>
    %105 = arith.mulf %76, %91 : vector<4x128xf32>
    %106 = arith.addf %104, %105 : vector<4x128xf32>
    %107 = arith.mulf %77, %83 : vector<4x128xf32>
    %108 = arith.mulf %78, %86 : vector<4x128xf32>
    %109 = arith.addf %107, %108 : vector<4x128xf32>
    %110 = arith.mulf %79, %89 : vector<4x128xf32>
    %111 = arith.addf %109, %110 : vector<4x128xf32>
    %112 = arith.mulf %77, %84 : vector<4x128xf32>
    %113 = arith.mulf %78, %87 : vector<4x128xf32>
    %114 = arith.addf %112, %113 : vector<4x128xf32>
    %115 = arith.mulf %79, %90 : vector<4x128xf32>
    %116 = arith.addf %114, %115 : vector<4x128xf32>
    %117 = arith.mulf %77, %85 : vector<4x128xf32>
    %118 = arith.mulf %78, %88 : vector<4x128xf32>
    %119 = arith.addf %117, %118 : vector<4x128xf32>
    %120 = arith.mulf %79, %91 : vector<4x128xf32>
    %121 = arith.addf %119, %120 : vector<4x128xf32>
    %122 = arith.mulf %80, %83 : vector<4x128xf32>
    %123 = arith.mulf %81, %86 : vector<4x128xf32>
    %124 = arith.addf %122, %123 : vector<4x128xf32>
    %125 = arith.mulf %82, %89 : vector<4x128xf32>
    %126 = arith.addf %124, %125 : vector<4x128xf32>
    %127 = arith.mulf %80, %84 : vector<4x128xf32>
    %128 = arith.mulf %81, %87 : vector<4x128xf32>
    %129 = arith.addf %127, %128 : vector<4x128xf32>
    %130 = arith.mulf %82, %90 : vector<4x128xf32>
    %131 = arith.addf %129, %130 : vector<4x128xf32>
    %132 = arith.mulf %80, %85 : vector<4x128xf32>
    %133 = arith.mulf %81, %88 : vector<4x128xf32>
    %134 = arith.addf %132, %133 : vector<4x128xf32>
    %135 = arith.mulf %82, %91 : vector<4x128xf32>
    %136 = arith.addf %134, %135 : vector<4x128xf32>
    %137 = vector.extract_strided_slice %96 {offsets = [0, 0], sizes = [2, 128], strides = [1, 1]} : vector<4x128xf32> to vector<2x128xf32>
    %138 = vector.extract_strided_slice %101 {offsets = [0, 0], sizes = [2, 128], strides = [1, 1]} : vector<4x128xf32> to vector<2x128xf32>
    %139 = vector.extract_strided_slice %106 {offsets = [0, 0], sizes = [2, 128], strides = [1, 1]} : vector<4x128xf32> to vector<2x128xf32>
    %140 = vector.extract_strided_slice %111 {offsets = [0, 0], sizes = [2, 128], strides = [1, 1]} : vector<4x128xf32> to vector<2x128xf32>
    %141 = vector.extract_strided_slice %116 {offsets = [0, 0], sizes = [2, 128], strides = [1, 1]} : vector<4x128xf32> to vector<2x128xf32>
    %142 = vector.extract_strided_slice %121 {offsets = [0, 0], sizes = [2, 128], strides = [1, 1]} : vector<4x128xf32> to vector<2x128xf32>
    %143 = vector.extract_strided_slice %126 {offsets = [0, 0], sizes = [2, 128], strides = [1, 1]} : vector<4x128xf32> to vector<2x128xf32>
    %144 = vector.extract_strided_slice %131 {offsets = [0, 0], sizes = [2, 128], strides = [1, 1]} : vector<4x128xf32> to vector<2x128xf32>
    %145 = vector.extract_strided_slice %136 {offsets = [0, 0], sizes = [2, 128], strides = [1, 1]} : vector<4x128xf32> to vector<2x128xf32>
    %146 = vector.extract_strided_slice %96 {offsets = [2, 0], sizes = [2, 128], strides = [1, 1]} : vector<4x128xf32> to vector<2x128xf32>
    %147 = vector.extract_strided_slice %101 {offsets = [2, 0], sizes = [2, 128], strides = [1, 1]} : vector<4x128xf32> to vector<2x128xf32>
    %148 = vector.extract_strided_slice %106 {offsets = [2, 0], sizes = [2, 128], strides = [1, 1]} : vector<4x128xf32> to vector<2x128xf32>
    %149 = vector.extract_strided_slice %111 {offsets = [2, 0], sizes = [2, 128], strides = [1, 1]} : vector<4x128xf32> to vector<2x128xf32>
    %150 = vector.extract_strided_slice %116 {offsets = [2, 0], sizes = [2, 128], strides = [1, 1]} : vector<4x128xf32> to vector<2x128xf32>
    %151 = vector.extract_strided_slice %121 {offsets = [2, 0], sizes = [2, 128], strides = [1, 1]} : vector<4x128xf32> to vector<2x128xf32>
    %152 = vector.extract_strided_slice %126 {offsets = [2, 0], sizes = [2, 128], strides = [1, 1]} : vector<4x128xf32> to vector<2x128xf32>
    %153 = vector.extract_strided_slice %131 {offsets = [2, 0], sizes = [2, 128], strides = [1, 1]} : vector<4x128xf32> to vector<2x128xf32>
    %154 = vector.extract_strided_slice %136 {offsets = [2, 0], sizes = [2, 128], strides = [1, 1]} : vector<4x128xf32> to vector<2x128xf32>
    %155 = arith.mulf %137, %146 : vector<2x128xf32>
    %156 = arith.mulf %138, %149 : vector<2x128xf32>
    %157 = arith.addf %155, %156 : vector<2x128xf32>
    %158 = arith.mulf %139, %152 : vector<2x128xf32>
    %159 = arith.addf %157, %158 : vector<2x128xf32>
    %160 = arith.mulf %137, %147 : vector<2x128xf32>
    %161 = arith.mulf %138, %150 : vector<2x128xf32>
    %162 = arith.addf %160, %161 : vector<2x128xf32>
    %163 = arith.mulf %139, %153 : vector<2x128xf32>
    %164 = arith.addf %162, %163 : vector<2x128xf32>
    %165 = arith.mulf %137, %148 : vector<2x128xf32>
    %166 = arith.mulf %138, %151 : vector<2x128xf32>
    %167 = arith.addf %165, %166 : vector<2x128xf32>
    %168 = arith.mulf %139, %154 : vector<2x128xf32>
    %169 = arith.addf %167, %168 : vector<2x128xf32>
    %170 = arith.mulf %140, %146 : vector<2x128xf32>
    %171 = arith.mulf %141, %149 : vector<2x128xf32>
    %172 = arith.addf %170, %171 : vector<2x128xf32>
    %173 = arith.mulf %142, %152 : vector<2x128xf32>
    %174 = arith.addf %172, %173 : vector<2x128xf32>
    %175 = arith.mulf %140, %147 : vector<2x128xf32>
    %176 = arith.mulf %141, %150 : vector<2x128xf32>
    %177 = arith.addf %175, %176 : vector<2x128xf32>
    %178 = arith.mulf %142, %153 : vector<2x128xf32>
    %179 = arith.addf %177, %178 : vector<2x128xf32>
    %180 = arith.mulf %140, %148 : vector<2x128xf32>
    %181 = arith.mulf %141, %151 : vector<2x128xf32>
    %182 = arith.addf %180, %181 : vector<2x128xf32>
    %183 = arith.mulf %142, %154 : vector<2x128xf32>
    %184 = arith.addf %182, %183 : vector<2x128xf32>
    %185 = arith.mulf %143, %146 : vector<2x128xf32>
    %186 = arith.mulf %144, %149 : vector<2x128xf32>
    %187 = arith.addf %185, %186 : vector<2x128xf32>
    %188 = arith.mulf %145, %152 : vector<2x128xf32>
    %189 = arith.addf %187, %188 : vector<2x128xf32>
    %190 = arith.mulf %143, %147 : vector<2x128xf32>
    %191 = arith.mulf %144, %150 : vector<2x128xf32>
    %192 = arith.addf %190, %191 : vector<2x128xf32>
    %193 = arith.mulf %145, %153 : vector<2x128xf32>
    %194 = arith.addf %192, %193 : vector<2x128xf32>
    %195 = arith.mulf %143, %148 : vector<2x128xf32>
    %196 = arith.mulf %144, %151 : vector<2x128xf32>
    %197 = arith.addf %195, %196 : vector<2x128xf32>
    %198 = arith.mulf %145, %154 : vector<2x128xf32>
    %199 = arith.addf %197, %198 : vector<2x128xf32>
    %c0_18 = arith.constant 0 : index
    %c0_19 = arith.constant 0 : index
    %c0_20 = arith.constant 0 : index
    %200 = vector.load %arg3[%c0_18, %c0_19, %c0_20] : memref<9x2x128xf32, #tpu.memory_space<vmem>>, vector<1x2x128xf32>
    %201 = vector.shape_cast %200 : vector<1x2x128xf32> to vector<2x128xf32>
    %c1_21 = arith.constant 1 : index
    %c0_22 = arith.constant 0 : index
    %c0_23 = arith.constant 0 : index
    %202 = vector.load %arg3[%c1_21, %c0_22, %c0_23] : memref<9x2x128xf32, #tpu.memory_space<vmem>>, vector<1x2x128xf32>
    %203 = vector.shape_cast %202 : vector<1x2x128xf32> to vector<2x128xf32>
    %c2_24 = arith.constant 2 : index
    %c0_25 = arith.constant 0 : index
    %c0_26 = arith.constant 0 : index
    %204 = vector.load %arg3[%c2_24, %c0_25, %c0_26] : memref<9x2x128xf32, #tpu.memory_space<vmem>>, vector<1x2x128xf32>
    %205 = vector.shape_cast %204 : vector<1x2x128xf32> to vector<2x128xf32>
    %c3 = arith.constant 3 : index
    %c0_27 = arith.constant 0 : index
    %c0_28 = arith.constant 0 : index
    %206 = vector.load %arg3[%c3, %c0_27, %c0_28] : memref<9x2x128xf32, #tpu.memory_space<vmem>>, vector<1x2x128xf32>
    %207 = vector.shape_cast %206 : vector<1x2x128xf32> to vector<2x128xf32>
    %c4 = arith.constant 4 : index
    %c0_29 = arith.constant 0 : index
    %c0_30 = arith.constant 0 : index
    %208 = vector.load %arg3[%c4, %c0_29, %c0_30] : memref<9x2x128xf32, #tpu.memory_space<vmem>>, vector<1x2x128xf32>
    %209 = vector.shape_cast %208 : vector<1x2x128xf32> to vector<2x128xf32>
    %c5 = arith.constant 5 : index
    %c0_31 = arith.constant 0 : index
    %c0_32 = arith.constant 0 : index
    %210 = vector.load %arg3[%c5, %c0_31, %c0_32] : memref<9x2x128xf32, #tpu.memory_space<vmem>>, vector<1x2x128xf32>
    %211 = vector.shape_cast %210 : vector<1x2x128xf32> to vector<2x128xf32>
    %c6 = arith.constant 6 : index
    %c0_33 = arith.constant 0 : index
    %c0_34 = arith.constant 0 : index
    %212 = vector.load %arg3[%c6, %c0_33, %c0_34] : memref<9x2x128xf32, #tpu.memory_space<vmem>>, vector<1x2x128xf32>
    %213 = vector.shape_cast %212 : vector<1x2x128xf32> to vector<2x128xf32>
    %c7 = arith.constant 7 : index
    %c0_35 = arith.constant 0 : index
    %c0_36 = arith.constant 0 : index
    %214 = vector.load %arg3[%c7, %c0_35, %c0_36] : memref<9x2x128xf32, #tpu.memory_space<vmem>>, vector<1x2x128xf32>
    %215 = vector.shape_cast %214 : vector<1x2x128xf32> to vector<2x128xf32>
    %c8 = arith.constant 8 : index
    %c0_37 = arith.constant 0 : index
    %c0_38 = arith.constant 0 : index
    %216 = vector.load %arg3[%c8, %c0_37, %c0_38] : memref<9x2x128xf32, #tpu.memory_space<vmem>>, vector<1x2x128xf32>
    %217 = vector.shape_cast %216 : vector<1x2x128xf32> to vector<2x128xf32>
    %218 = arith.mulf %159, %201 : vector<2x128xf32>
    %219 = arith.mulf %174, %207 : vector<2x128xf32>
    %220 = arith.addf %218, %219 : vector<2x128xf32>
    %221 = arith.mulf %189, %213 : vector<2x128xf32>
    %222 = arith.addf %220, %221 : vector<2x128xf32>
    %c0_39 = arith.constant 0 : index
    %c0_40 = arith.constant 0 : index
    %c0_41 = arith.constant 0 : index
    %223 = vector.load %arg4[%c0_39, %c0_40, %c0_41] : memref<9x2x128xf32, #tpu.memory_space<vmem>>, vector<1x2x128xf32>
    %224 = vector.shape_cast %223 : vector<1x2x128xf32> to vector<2x128xf32>
    %225 = vector.shape_cast %222 : vector<2x128xf32> to vector<1x2x128xf32>
    tpu.vector_store %arg4[%c0_39, %c0_40, %c0_41], %225 {strides = array<i32>} : memref<9x2x128xf32, #tpu.memory_space<vmem>>, vector<1x2x128xf32>,
    %226 = arith.mulf %159, %203 : vector<2x128xf32>
    %227 = arith.mulf %174, %209 : vector<2x128xf32>
    %228 = arith.addf %226, %227 : vector<2x128xf32>
    %229 = arith.mulf %189, %215 : vector<2x128xf32>
    %230 = arith.addf %228, %229 : vector<2x128xf32>
    %c1_42 = arith.constant 1 : index
    %c0_43 = arith.constant 0 : index
    %c0_44 = arith.constant 0 : index
    %231 = vector.load %arg4[%c1_42, %c0_43, %c0_44] : memref<9x2x128xf32, #tpu.memory_space<vmem>>, vector<1x2x128xf32>
    %232 = vector.shape_cast %231 : vector<1x2x128xf32> to vector<2x128xf32>
    %233 = vector.shape_cast %230 : vector<2x128xf32> to vector<1x2x128xf32>
    tpu.vector_store %arg4[%c1_42, %c0_43, %c0_44], %233 {strides = array<i32>} : memref<9x2x128xf32, #tpu.memory_space<vmem>>, vector<1x2x128xf32>,
    %234 = arith.mulf %159, %205 : vector<2x128xf32>
    %235 = arith.mulf %174, %211 : vector<2x128xf32>
    %236 = arith.addf %234, %235 : vector<2x128xf32>
    %237 = arith.mulf %189, %217 : vector<2x128xf32>
    %238 = arith.addf %236, %237 : vector<2x128xf32>
    %c2_45 = arith.constant 2 : index
    %c0_46 = arith.constant 0 : index
    %c0_47 = arith.constant 0 : index
    %239 = vector.load %arg4[%c2_45, %c0_46, %c0_47] : memref<9x2x128xf32, #tpu.memory_space<vmem>>, vector<1x2x128xf32>
    %240 = vector.shape_cast %239 : vector<1x2x128xf32> to vector<2x128xf32>
    %241 = vector.shape_cast %238 : vector<2x128xf32> to vector<1x2x128xf32>
    tpu.vector_store %arg4[%c2_45, %c0_46, %c0_47], %241 {strides = array<i32>} : memref<9x2x128xf32, #tpu.memory_space<vmem>>, vector<1x2x128xf32>,
    %242 = arith.mulf %164, %201 : vector<2x128xf32>
    %243 = arith.mulf %179, %207 : vector<2x128xf32>
    %244 = arith.addf %242, %243 : vector<2x128xf32>
    %245 = arith.mulf %194, %213 : vector<2x128xf32>
    %246 = arith.addf %244, %245 : vector<2x128xf32>
    %c3_48 = arith.constant 3 : index
    %c0_49 = arith.constant 0 : index
    %c0_50 = arith.constant 0 : index
    %247 = vector.load %arg4[%c3_48, %c0_49, %c0_50] : memref<9x2x128xf32, #tpu.memory_space<vmem>>, vector<1x2x128xf32>
    %248 = vector.shape_cast %247 : vector<1x2x128xf32> to vector<2x128xf32>
    %249 = vector.shape_cast %246 : vector<2x128xf32> to vector<1x2x128xf32>
    tpu.vector_store %arg4[%c3_48, %c0_49, %c0_50], %249 {strides = array<i32>} : memref<9x2x128xf32, #tpu.memory_space<vmem>>, vector<1x2x128xf32>,
    %250 = arith.mulf %164, %203 : vector<2x128xf32>
    %251 = arith.mulf %179, %209 : vector<2x128xf32>
    %252 = arith.addf %250, %251 : vector<2x128xf32>
    %253 = arith.mulf %194, %215 : vector<2x128xf32>
    %254 = arith.addf %252, %253 : vector<2x128xf32>
    %c4_51 = arith.constant 4 : index
    %c0_52 = arith.constant 0 : index
    %c0_53 = arith.constant 0 : index
    %255 = vector.load %arg4[%c4_51, %c0_52, %c0_53] : memref<9x2x128xf32, #tpu.memory_space<vmem>>, vector<1x2x128xf32>
    %256 = vector.shape_cast %255 : vector<1x2x128xf32> to vector<2x128xf32>
    %257 = vector.shape_cast %254 : vector<2x128xf32> to vector<1x2x128xf32>
    tpu.vector_store %arg4[%c4_51, %c0_52, %c0_53], %257 {strides = array<i32>} : memref<9x2x128xf32, #tpu.memory_space<vmem>>, vector<1x2x128xf32>,
    %258 = arith.mulf %164, %205 : vector<2x128xf32>
    %259 = arith.mulf %179, %211 : vector<2x128xf32>
    %260 = arith.addf %258, %259 : vector<2x128xf32>
    %261 = arith.mulf %194, %217 : vector<2x128xf32>
    %262 = arith.addf %260, %261 : vector<2x128xf32>
    %c5_54 = arith.constant 5 : index
    %c0_55 = arith.constant 0 : index
    %c0_56 = arith.constant 0 : index
    %263 = vector.load %arg4[%c5_54, %c0_55, %c0_56] : memref<9x2x128xf32, #tpu.memory_space<vmem>>, vector<1x2x128xf32>
    %264 = vector.shape_cast %263 : vector<1x2x128xf32> to vector<2x128xf32>
    %265 = vector.shape_cast %262 : vector<2x128xf32> to vector<1x2x128xf32>
    tpu.vector_store %arg4[%c5_54, %c0_55, %c0_56], %265 {strides = array<i32>} : memref<9x2x128xf32, #tpu.memory_space<vmem>>, vector<1x2x128xf32>,
    %266 = arith.mulf %169, %201 : vector<2x128xf32>
    %267 = arith.mulf %184, %207 : vector<2x128xf32>
    %268 = arith.addf %266, %267 : vector<2x128xf32>
    %269 = arith.mulf %199, %213 : vector<2x128xf32>
    %270 = arith.addf %268, %269 : vector<2x128xf32>
    %c6_57 = arith.constant 6 : index
    %c0_58 = arith.constant 0 : index
    %c0_59 = arith.constant 0 : index
    %271 = vector.load %arg4[%c6_57, %c0_58, %c0_59] : memref<9x2x128xf32, #tpu.memory_space<vmem>>, vector<1x2x128xf32>
    %272 = vector.shape_cast %271 : vector<1x2x128xf32> to vector<2x128xf32>
    %273 = vector.shape_cast %270 : vector<2x128xf32> to vector<1x2x128xf32>
    tpu.vector_store %arg4[%c6_57, %c0_58, %c0_59], %273 {strides = array<i32>} : memref<9x2x128xf32, #tpu.memory_space<vmem>>, vector<1x2x128xf32>,
    %274 = arith.mulf %169, %203 : vector<2x128xf32>
    %275 = arith.mulf %184, %209 : vector<2x128xf32>
    %276 = arith.addf %274, %275 : vector<2x128xf32>
    %277 = arith.mulf %199, %215 : vector<2x128xf32>
    %278 = arith.addf %276, %277 : vector<2x128xf32>
    %c7_60 = arith.constant 7 : index
    %c0_61 = arith.constant 0 : index
    %c0_62 = arith.constant 0 : index
    %279 = vector.load %arg4[%c7_60, %c0_61, %c0_62] : memref<9x2x128xf32, #tpu.memory_space<vmem>>, vector<1x2x128xf32>
    %280 = vector.shape_cast %279 : vector<1x2x128xf32> to vector<2x128xf32>
    %281 = vector.shape_cast %278 : vector<2x128xf32> to vector<1x2x128xf32>
    tpu.vector_store %arg4[%c7_60, %c0_61, %c0_62], %281 {strides = array<i32>} : memref<9x2x128xf32, #tpu.memory_space<vmem>>, vector<1x2x128xf32>,
    %282 = arith.mulf %169, %205 : vector<2x128xf32>
    %283 = arith.mulf %184, %211 : vector<2x128xf32>
    %284 = arith.addf %282, %283 : vector<2x128xf32>
    %285 = arith.mulf %199, %217 : vector<2x128xf32>
    %286 = arith.addf %284, %285 : vector<2x128xf32>
    %c8_63 = arith.constant 8 : index
    %c0_64 = arith.constant 0 : index
    %c0_65 = arith.constant 0 : index
    %287 = vector.load %arg4[%c8_63, %c0_64, %c0_65] : memref<9x2x128xf32, #tpu.memory_space<vmem>>, vector<1x2x128xf32>
    %288 = vector.shape_cast %287 : vector<1x2x128xf32> to vector<2x128xf32>
    %289 = vector.shape_cast %286 : vector<2x128xf32> to vector<1x2x128xf32>
    tpu.vector_store %arg4[%c8_63, %c0_64, %c0_65], %289 {strides = array<i32>} : memref<9x2x128xf32, #tpu.memory_space<vmem>>, vector<1x2x128xf32>,
    %290 = vector.extract_strided_slice %159 {offsets = [0, 0], sizes = [1, 128], strides = [1, 1]} : vector<2x128xf32> to vector<1x128xf32>
    %291 = vector.extract_strided_slice %164 {offsets = [0, 0], sizes = [1, 128], strides = [1, 1]} : vector<2x128xf32> to vector<1x128xf32>
    %292 = vector.extract_strided_slice %169 {offsets = [0, 0], sizes = [1, 128], strides = [1, 1]} : vector<2x128xf32> to vector<1x128xf32>
    %293 = vector.extract_strided_slice %174 {offsets = [0, 0], sizes = [1, 128], strides = [1, 1]} : vector<2x128xf32> to vector<1x128xf32>
    %294 = vector.extract_strided_slice %179 {offsets = [0, 0], sizes = [1, 128], strides = [1, 1]} : vector<2x128xf32> to vector<1x128xf32>
    %295 = vector.extract_strided_slice %184 {offsets = [0, 0], sizes = [1, 128], strides = [1, 1]} : vector<2x128xf32> to vector<1x128xf32>
    %296 = vector.extract_strided_slice %189 {offsets = [0, 0], sizes = [1, 128], strides = [1, 1]} : vector<2x128xf32> to vector<1x128xf32>
    %297 = vector.extract_strided_slice %194 {offsets = [0, 0], sizes = [1, 128], strides = [1, 1]} : vector<2x128xf32> to vector<1x128xf32>
    %298 = vector.extract_strided_slice %199 {offsets = [0, 0], sizes = [1, 128], strides = [1, 1]} : vector<2x128xf32> to vector<1x128xf32>
    %299 = vector.extract_strided_slice %159 {offsets = [1, 0], sizes = [1, 128], strides = [1, 1]} : vector<2x128xf32> to vector<1x128xf32>
    %300 = vector.extract_strided_slice %164 {offsets = [1, 0], sizes = [1, 128], strides = [1, 1]} : vector<2x128xf32> to vector<1x128xf32>
    %301 = vector.extract_strided_slice %169 {offsets = [1, 0], sizes = [1, 128], strides = [1, 1]} : vector<2x128xf32> to vector<1x128xf32>
    %302 = vector.extract_strided_slice %174 {offsets = [1, 0], sizes = [1, 128], strides = [1, 1]} : vector<2x128xf32> to vector<1x128xf32>
    %303 = vector.extract_strided_slice %179 {offsets = [1, 0], sizes = [1, 128], strides = [1, 1]} : vector<2x128xf32> to vector<1x128xf32>
    %304 = vector.extract_strided_slice %184 {offsets = [1, 0], sizes = [1, 128], strides = [1, 1]} : vector<2x128xf32> to vector<1x128xf32>
    %305 = vector.extract_strided_slice %189 {offsets = [1, 0], sizes = [1, 128], strides = [1, 1]} : vector<2x128xf32> to vector<1x128xf32>
    %306 = vector.extract_strided_slice %194 {offsets = [1, 0], sizes = [1, 128], strides = [1, 1]} : vector<2x128xf32> to vector<1x128xf32>
    %307 = vector.extract_strided_slice %199 {offsets = [1, 0], sizes = [1, 128], strides = [1, 1]} : vector<2x128xf32> to vector<1x128xf32>
    %308 = vector.extract_strided_slice %201 {offsets = [0, 0], sizes = [1, 128], strides = [1, 1]} : vector<2x128xf32> to vector<1x128xf32>
    %309 = vector.extract_strided_slice %203 {offsets = [0, 0], sizes = [1, 128], strides = [1, 1]} : vector<2x128xf32> to vector<1x128xf32>
    %310 = vector.extract_strided_slice %205 {offsets = [0, 0], sizes = [1, 128], strides = [1, 1]} : vector<2x128xf32> to vector<1x128xf32>
    %311 = vector.extract_strided_slice %207 {offsets = [0, 0], sizes = [1, 128], strides = [1, 1]} : vector<2x128xf32> to vector<1x128xf32>
    %312 = vector.extract_strided_slice %209 {offsets = [0, 0], sizes = [1, 128], strides = [1, 1]} : vector<2x128xf32> to vector<1x128xf32>
    %313 = vector.extract_strided_slice %211 {offsets = [0, 0], sizes = [1, 128], strides = [1, 1]} : vector<2x128xf32> to vector<1x128xf32>
    %314 = vector.extract_strided_slice %213 {offsets = [0, 0], sizes = [1, 128], strides = [1, 1]} : vector<2x128xf32> to vector<1x128xf32>
    %315 = vector.extract_strided_slice %215 {offsets = [0, 0], sizes = [1, 128], strides = [1, 1]} : vector<2x128xf32> to vector<1x128xf32>
    %316 = vector.extract_strided_slice %217 {offsets = [0, 0], sizes = [1, 128], strides = [1, 1]} : vector<2x128xf32> to vector<1x128xf32>
    %317 = vector.extract_strided_slice %201 {offsets = [1, 0], sizes = [1, 128], strides = [1, 1]} : vector<2x128xf32> to vector<1x128xf32>
    %318 = vector.extract_strided_slice %203 {offsets = [1, 0], sizes = [1, 128], strides = [1, 1]} : vector<2x128xf32> to vector<1x128xf32>
    %319 = vector.extract_strided_slice %205 {offsets = [1, 0], sizes = [1, 128], strides = [1, 1]} : vector<2x128xf32> to vector<1x128xf32>
    %320 = vector.extract_strided_slice %207 {offsets = [1, 0], sizes = [1, 128], strides = [1, 1]} : vector<2x128xf32> to vector<1x128xf32>
    %321 = vector.extract_strided_slice %209 {offsets = [1, 0], sizes = [1, 128], strides = [1, 1]} : vector<2x128xf32> to vector<1x128xf32>
    %322 = vector.extract_strided_slice %211 {offsets = [1, 0], sizes = [1, 128], strides = [1, 1]} : vector<2x128xf32> to vector<1x128xf32>
    %323 = vector.extract_strided_slice %213 {offsets = [1, 0], sizes = [1, 128], strides = [1, 1]} : vector<2x128xf32> to vector<1x128xf32>
    %324 = vector.extract_strided_slice %215 {offsets = [1, 0], sizes = [1, 128], strides = [1, 1]} : vector<2x128xf32> to vector<1x128xf32>
    %325 = vector.extract_strided_slice %217 {offsets = [1, 0], sizes = [1, 128], strides = [1, 1]} : vector<2x128xf32> to vector<1x128xf32>
    %326 = arith.mulf %290, %299 : vector<1x128xf32>
    %327 = arith.mulf %291, %302 : vector<1x128xf32>
    %328 = arith.addf %326, %327 : vector<1x128xf32>
    %329 = arith.mulf %292, %305 : vector<1x128xf32>
    %330 = arith.addf %328, %329 : vector<1x128xf32>
    %331 = arith.mulf %290, %300 : vector<1x128xf32>
    %332 = arith.mulf %291, %303 : vector<1x128xf32>
    %333 = arith.addf %331, %332 : vector<1x128xf32>
    %334 = arith.mulf %292, %306 : vector<1x128xf32>
    %335 = arith.addf %333, %334 : vector<1x128xf32>
    %336 = arith.mulf %290, %301 : vector<1x128xf32>
    %337 = arith.mulf %291, %304 : vector<1x128xf32>
    %338 = arith.addf %336, %337 : vector<1x128xf32>
    %339 = arith.mulf %292, %307 : vector<1x128xf32>
    %340 = arith.addf %338, %339 : vector<1x128xf32>
    %341 = arith.mulf %293, %299 : vector<1x128xf32>
    %342 = arith.mulf %294, %302 : vector<1x128xf32>
    %343 = arith.addf %341, %342 : vector<1x128xf32>
    %344 = arith.mulf %295, %305 : vector<1x128xf32>
    %345 = arith.addf %343, %344 : vector<1x128xf32>
    %346 = arith.mulf %293, %300 : vector<1x128xf32>
    %347 = arith.mulf %294, %303 : vector<1x128xf32>
    %348 = arith.addf %346, %347 : vector<1x128xf32>
    %349 = arith.mulf %295, %306 : vector<1x128xf32>
    %350 = arith.addf %348, %349 : vector<1x128xf32>
    %351 = arith.mulf %293, %301 : vector<1x128xf32>
    %352 = arith.mulf %294, %304 : vector<1x128xf32>
    %353 = arith.addf %351, %352 : vector<1x128xf32>
    %354 = arith.mulf %295, %307 : vector<1x128xf32>
    %355 = arith.addf %353, %354 : vector<1x128xf32>
    %356 = arith.mulf %296, %299 : vector<1x128xf32>
    %357 = arith.mulf %297, %302 : vector<1x128xf32>
    %358 = arith.addf %356, %357 : vector<1x128xf32>
    %359 = arith.mulf %298, %305 : vector<1x128xf32>
    %360 = arith.addf %358, %359 : vector<1x128xf32>
    %361 = arith.mulf %296, %300 : vector<1x128xf32>
    %362 = arith.mulf %297, %303 : vector<1x128xf32>
    %363 = arith.addf %361, %362 : vector<1x128xf32>
    %364 = arith.mulf %298, %306 : vector<1x128xf32>
    %365 = arith.addf %363, %364 : vector<1x128xf32>
    %366 = arith.mulf %296, %301 : vector<1x128xf32>
    %367 = arith.mulf %297, %304 : vector<1x128xf32>
    %368 = arith.addf %366, %367 : vector<1x128xf32>
    %369 = arith.mulf %298, %307 : vector<1x128xf32>
    %370 = arith.addf %368, %369 : vector<1x128xf32>
    %371 = arith.mulf %308, %317 : vector<1x128xf32>
    %372 = arith.mulf %309, %320 : vector<1x128xf32>
    %373 = arith.addf %371, %372 : vector<1x128xf32>
    %374 = arith.mulf %310, %323 : vector<1x128xf32>
    %375 = arith.addf %373, %374 : vector<1x128xf32>
    %376 = arith.mulf %308, %318 : vector<1x128xf32>
    %377 = arith.mulf %309, %321 : vector<1x128xf32>
    %378 = arith.addf %376, %377 : vector<1x128xf32>
    %379 = arith.mulf %310, %324 : vector<1x128xf32>
    %380 = arith.addf %378, %379 : vector<1x128xf32>
    %381 = arith.mulf %308, %319 : vector<1x128xf32>
    %382 = arith.mulf %309, %322 : vector<1x128xf32>
    %383 = arith.addf %381, %382 : vector<1x128xf32>
    %384 = arith.mulf %310, %325 : vector<1x128xf32>
    %385 = arith.addf %383, %384 : vector<1x128xf32>
    %386 = arith.mulf %311, %317 : vector<1x128xf32>
    %387 = arith.mulf %312, %320 : vector<1x128xf32>
    %388 = arith.addf %386, %387 : vector<1x128xf32>
    %389 = arith.mulf %313, %323 : vector<1x128xf32>
    %390 = arith.addf %388, %389 : vector<1x128xf32>
    %391 = arith.mulf %311, %318 : vector<1x128xf32>
    %392 = arith.mulf %312, %321 : vector<1x128xf32>
    %393 = arith.addf %391, %392 : vector<1x128xf32>
    %394 = arith.mulf %313, %324 : vector<1x128xf32>
    %395 = arith.addf %393, %394 : vector<1x128xf32>
    %396 = arith.mulf %311, %319 : vector<1x128xf32>
    %397 = arith.mulf %312, %322 : vector<1x128xf32>
    %398 = arith.addf %396, %397 : vector<1x128xf32>
    %399 = arith.mulf %313, %325 : vector<1x128xf32>
    %400 = arith.addf %398, %399 : vector<1x128xf32>
    %401 = arith.mulf %314, %317 : vector<1x128xf32>
    %402 = arith.mulf %315, %320 : vector<1x128xf32>
    %403 = arith.addf %401, %402 : vector<1x128xf32>
    %404 = arith.mulf %316, %323 : vector<1x128xf32>
    %405 = arith.addf %403, %404 : vector<1x128xf32>
    %406 = arith.mulf %314, %318 : vector<1x128xf32>
    %407 = arith.mulf %315, %321 : vector<1x128xf32>
    %408 = arith.addf %406, %407 : vector<1x128xf32>
    %409 = arith.mulf %316, %324 : vector<1x128xf32>
    %410 = arith.addf %408, %409 : vector<1x128xf32>
    %411 = arith.mulf %314, %319 : vector<1x128xf32>
    %412 = arith.mulf %315, %322 : vector<1x128xf32>
    %413 = arith.addf %411, %412 : vector<1x128xf32>
    %414 = arith.mulf %316, %325 : vector<1x128xf32>
    %415 = arith.addf %413, %414 : vector<1x128xf32>
    %416 = arith.mulf %330, %375 : vector<1x128xf32>
    %417 = arith.mulf %345, %390 : vector<1x128xf32>
    %418 = arith.addf %416, %417 : vector<1x128xf32>
    %419 = arith.mulf %360, %405 : vector<1x128xf32>
    %420 = arith.addf %418, %419 : vector<1x128xf32>
    %c0_66 = arith.constant 0 : index
    %c0_67 = arith.constant 0 : index
    %421 = vector.load %arg5[%c0_66, %c0_67] : memref<9x128xf32, #tpu.memory_space<vmem>>, vector<1x128xf32>
    tpu.vector_store %arg5[%c0_66, %c0_67], %420 {strides = array<i32>} : memref<9x128xf32, #tpu.memory_space<vmem>>, vector<1x128xf32>,
    %422 = arith.mulf %330, %380 : vector<1x128xf32>
    %423 = arith.mulf %345, %395 : vector<1x128xf32>
    %424 = arith.addf %422, %423 : vector<1x128xf32>
    %425 = arith.mulf %360, %410 : vector<1x128xf32>
    %426 = arith.addf %424, %425 : vector<1x128xf32>
    %c1_68 = arith.constant 1 : index
    %c0_69 = arith.constant 0 : index
    %427 = vector.load %arg5[%c1_68, %c0_69] : memref<9x128xf32, #tpu.memory_space<vmem>>, vector<1x128xf32>
    tpu.vector_store %arg5[%c1_68, %c0_69], %426 {strides = array<i32>} : memref<9x128xf32, #tpu.memory_space<vmem>>, vector<1x128xf32>,
    %428 = arith.mulf %330, %385 : vector<1x128xf32>
    %429 = arith.mulf %345, %400 : vector<1x128xf32>
    %430 = arith.addf %428, %429 : vector<1x128xf32>
    %431 = arith.mulf %360, %415 : vector<1x128xf32>
    %432 = arith.addf %430, %431 : vector<1x128xf32>
    %c2_70 = arith.constant 2 : index
    %c0_71 = arith.constant 0 : index
    %433 = vector.load %arg5[%c2_70, %c0_71] : memref<9x128xf32, #tpu.memory_space<vmem>>, vector<1x128xf32>
    tpu.vector_store %arg5[%c2_70, %c0_71], %432 {strides = array<i32>} : memref<9x128xf32, #tpu.memory_space<vmem>>, vector<1x128xf32>,
    %434 = arith.mulf %335, %375 : vector<1x128xf32>
    %435 = arith.mulf %350, %390 : vector<1x128xf32>
    %436 = arith.addf %434, %435 : vector<1x128xf32>
    %437 = arith.mulf %365, %405 : vector<1x128xf32>
    %438 = arith.addf %436, %437 : vector<1x128xf32>
    %c3_72 = arith.constant 3 : index
    %c0_73 = arith.constant 0 : index
    %439 = vector.load %arg5[%c3_72, %c0_73] : memref<9x128xf32, #tpu.memory_space<vmem>>, vector<1x128xf32>
    tpu.vector_store %arg5[%c3_72, %c0_73], %438 {strides = array<i32>} : memref<9x128xf32, #tpu.memory_space<vmem>>, vector<1x128xf32>,
    %440 = arith.mulf %335, %380 : vector<1x128xf32>
    %441 = arith.mulf %350, %395 : vector<1x128xf32>
    %442 = arith.addf %440, %441 : vector<1x128xf32>
    %443 = arith.mulf %365, %410 : vector<1x128xf32>
    %444 = arith.addf %442, %443 : vector<1x128xf32>
    %c4_74 = arith.constant 4 : index
    %c0_75 = arith.constant 0 : index
    %445 = vector.load %arg5[%c4_74, %c0_75] : memref<9x128xf32, #tpu.memory_space<vmem>>, vector<1x128xf32>
    tpu.vector_store %arg5[%c4_74, %c0_75], %444 {strides = array<i32>} : memref<9x128xf32, #tpu.memory_space<vmem>>, vector<1x128xf32>,
    %446 = arith.mulf %335, %385 : vector<1x128xf32>
    %447 = arith.mulf %350, %400 : vector<1x128xf32>
    %448 = arith.addf %446, %447 : vector<1x128xf32>
    %449 = arith.mulf %365, %415 : vector<1x128xf32>
    %450 = arith.addf %448, %449 : vector<1x128xf32>
    %c5_76 = arith.constant 5 : index
    %c0_77 = arith.constant 0 : index
    %451 = vector.load %arg5[%c5_76, %c0_77] : memref<9x128xf32, #tpu.memory_space<vmem>>, vector<1x128xf32>
    tpu.vector_store %arg5[%c5_76, %c0_77], %450 {strides = array<i32>} : memref<9x128xf32, #tpu.memory_space<vmem>>, vector<1x128xf32>,
    %452 = arith.mulf %340, %375 : vector<1x128xf32>
    %453 = arith.mulf %355, %390 : vector<1x128xf32>
    %454 = arith.addf %452, %453 : vector<1x128xf32>
    %455 = arith.mulf %370, %405 : vector<1x128xf32>
    %456 = arith.addf %454, %455 : vector<1x128xf32>
    %c6_78 = arith.constant 6 : index
    %c0_79 = arith.constant 0 : index
    %457 = vector.load %arg5[%c6_78, %c0_79] : memref<9x128xf32, #tpu.memory_space<vmem>>, vector<1x128xf32>
    tpu.vector_store %arg5[%c6_78, %c0_79], %456 {strides = array<i32>} : memref<9x128xf32, #tpu.memory_space<vmem>>, vector<1x128xf32>,
    %458 = arith.mulf %340, %380 : vector<1x128xf32>
    %459 = arith.mulf %355, %395 : vector<1x128xf32>
    %460 = arith.addf %458, %459 : vector<1x128xf32>
    %461 = arith.mulf %370, %410 : vector<1x128xf32>
    %462 = arith.addf %460, %461 : vector<1x128xf32>
    %c7_80 = arith.constant 7 : index
    %c0_81 = arith.constant 0 : index
    %463 = vector.load %arg5[%c7_80, %c0_81] : memref<9x128xf32, #tpu.memory_space<vmem>>, vector<1x128xf32>
    tpu.vector_store %arg5[%c7_80, %c0_81], %462 {strides = array<i32>} : memref<9x128xf32, #tpu.memory_space<vmem>>, vector<1x128xf32>,
    %464 = arith.mulf %340, %385 : vector<1x128xf32>
    %465 = arith.mulf %355, %400 : vector<1x128xf32>
    %466 = arith.addf %464, %465 : vector<1x128xf32>
    %467 = arith.mulf %370, %415 : vector<1x128xf32>
    %468 = arith.addf %466, %467 : vector<1x128xf32>
    %c8_82 = arith.constant 8 : index
    %c0_83 = arith.constant 0 : index
    %469 = vector.load %arg5[%c8_82, %c0_83] : memref<9x128xf32, #tpu.memory_space<vmem>>, vector<1x128xf32>
    tpu.vector_store %arg5[%c8_82, %c0_83], %468 {strides = array<i32>} : memref<9x128xf32, #tpu.memory_space<vmem>>, vector<1x128xf32>,
    return
  }
  func.func @transform_0(%arg0: i32) -> (i32, i32, i32) {
    %c0_i32 = arith.constant 0 : i32
    %c0_i32_0 = arith.constant 0 : i32
    %c0_i32_1 = arith.constant 0 : i32
    return %c0_i32, %c0_i32_0, %arg0 : i32, i32, i32
  }
  func.func @transform_1(%arg0: i32) -> (i32, i32, i32) {
    %c0_i32 = arith.constant 0 : i32
    %c0_i32_0 = arith.constant 0 : i32
    %c0_i32_1 = arith.constant 0 : i32
    return %c0_i32, %c0_i32_0, %arg0 : i32, i32, i32
  }
  func.func @transform_2(%arg0: i32) -> (i32, i32, i32) {
    %c0_i32 = arith.constant 0 : i32
    %c0_i32_0 = arith.constant 0 : i32
    %c0_i32_1 = arith.constant 0 : i32
    return %c0_i32, %c0_i32_0, %arg0 : i32, i32, i32
  }
  func.func @transform_3(%arg0: i32) -> (i32, i32, i32) {
    %c0_i32 = arith.constant 0 : i32
    %c0_i32_0 = arith.constant 0 : i32
    %c0_i32_1 = arith.constant 0 : i32
    return %c0_i32, %c0_i32_0, %arg0 : i32, i32, i32
  }
  func.func @transform_4(%arg0: i32) -> (i32, i32) {
    %c0_i32 = arith.constant 0 : i32
    %c0_i32_0 = arith.constant 0 : i32
    return %c0_i32, %arg0 : i32, i32
  }
}

</mosaic_0001>

<llo_original>
// kernel: imu_loss.2
$region0: #{imu_loss.2}
  #allocation0 [shape = 'u32[]', space=smem, size = 0x4, offset = 0x4, fixed_abs, tag = 'smem constant byte address 0x4 - core index']
  #allocation1 [shape = 'u32[144,128]{1,0:T(1,128)}', space=vmem, size = 0x12000, scoped, tag = 'internal scratch']
  %s0 = inlined_call_operand.vmem [shape: f32[9,16,128], index: 0, kind: input, shape index: {}]
  %s1 = inlined_call_operand.vmem [shape: f32[3,16,128], index: 1, kind: input, shape index: {}]
  %s2 = inlined_call_operand.vmem [shape: f32[3,128], index: 2, kind: input, shape index: {}]
  %s3 = inlined_call_operand.vmem [shape: f32[1,1,128], index: 3, kind: output, shape index: {}]
  %s4 = sld [smem:[#allocation0]]
  $region22: #{imu_loss.2} parent=0
    _
  %s6 = ssub.s32 1, %s4
  %s7 = scalar_select 0, %s6, %s4
  // Predicated region
  $region2: #{imu_loss.2} parent=0 // pred_check
    _
  $region3: #{imu_loss.2} parent=0 // pred_check_branch
    %9 = sbr.rel (0) target = $region5
  $region4: #{imu_loss.2} parent=0 // pred_region
    _
  $region5: #{imu_loss.2} parent=0 // pred_fallthru
    _
  // Predicated region
  $region6: #{imu_loss.2} parent=0 // pred_check
    _
  $region7: #{imu_loss.2} parent=0 // pred_check_branch
    %11 = sbr.rel (0) target = $region9
  $region8: #{imu_loss.2} parent=0 // pred_region
    _
  $region9: #{imu_loss.2} parent=0 // pred_fallthru
    _
  // Predicated region
  $region10: #{imu_loss.2} parent=0 // pred_check
    _
  $region11: #{imu_loss.2} parent=0 // pred_check_branch
    %13 = sbr.rel (0) target = $region13
  $region12: #{imu_loss.2} parent=0 // pred_region
    _
  $region13: #{imu_loss.2} parent=0 // pred_fallthru
    _
  %v14 = vlaneseq
  %v15 = vshrl.u32 %v14, 7
  %v16 = vadd.s32 %v15, 8
  %v17 = vcvt.s32.f32 %v15
  %v18 = vcvt.s32.f32 %v16
  %vm19 = vcmp.lt.s32.totalorder %v15, 8
  %vm20 = vcmp.lt.s32.totalorder %v16, 8
  %v21 = vadd.f32 %v17, 0.5
  %v22 = vadd.f32 %v18, 0.5
  %v23 = vsub.f32 15.5, %v17
  %v24 = vsub.f32 15.5, %v18
  %v25 = vsel %vm19, %v21, %v23
  %v26 = vsel %vm20, %v22, %v24
  %v27 = vmul.f32 %v25, 2.5e-05
  %v28 = vmul.f32 %v26, 2.5e-05
  %v29 = vld [vmem:[%s1] sm:$0xff]
  %v30 = vld [vmem:[%s1 + $0x8] sm:$0xff]
  %s31 = scalar_lea.vmem %s1, 16
  %v32 = vld [vmem:[%s31] sm:$0xff]
  %v33 = vld [vmem:[%s31 + $0x8] sm:$0xff]
  %s34 = scalar_lea.vmem %s1, 32
  %v35 = vld [vmem:[%s34] sm:$0xff]
  %v36 = vld [vmem:[%s34 + $0x8] sm:$0xff]
  %v37 = vld [vmem:[%s0] sm:$0xff]
  %v38 = vld [vmem:[%s0 + $0x8] sm:$0xff]
  %v39 = vmul.f32 %v37, %v29
  %v40 = vmul.f32 %v38, %v30
  %s41 = scalar_lea.vmem %s0, 16
  %v42 = vld [vmem:[%s41] sm:$0xff]
  %v43 = vld [vmem:[%s41 + $0x8] sm:$0xff]
  %v44 = vmul.f32 %v42, %v32
  %v45 = vmul.f32 %v43, %v33
  %v46 = vadd.f32 %v39, %v44
  %v47 = vadd.f32 %v40, %v45
  %s48 = scalar_lea.vmem %s0, 32
  %v49 = vld [vmem:[%s48] sm:$0xff]
  %v50 = vld [vmem:[%s48 + $0x8] sm:$0xff]
  %v51 = vmul.f32 %v49, %v35
  %v52 = vmul.f32 %v50, %v36
  %v53 = vadd.f32 %v46, %v51
  %v54 = vadd.f32 %v47, %v52
  %v55 = vmul.f32 %v27, %v53
  %v56 = vmul.f32 %v28, %v54
  %v57 = vadd.f32 %v55, %v56
  %v58 = vrot.slane %v57, 4
  %v59 = vadd.f32 %v57, %v58
  %v60 = vrot.slane %v59, 2
  %v61 = vadd.f32 %v59, %v60
  %v62 = vrot.slane %v61, 1
  %v63 = vadd.f32 %v61, %v62
  %v64 = vld [vmem:[%s2] sm:$0x1]
  %v65 = vsub.f32 %v63, %v64
  %v66 = vand.u32 2147483647, %v65
  %vm67 = vcmp.le.f32.partialorder %v66, 0.005
  %v68 = vmul.f32 %v65, 0.5
  %v69 = vmul.f32 %v68, %v65
  %v70 = vsub.f32 %v66, 0.0025
  %v71 = vmul.f32 %v70, 0.005
  %v72 = vsel %vm67, %v69, %v71
  %v73 = vadd.f32 %v72, 0.0
  %s74 = scalar_lea.vmem %s0, 48
  %v75 = vld [vmem:[%s74] sm:$0xff]
  %v76 = vld [vmem:[%s74 + $0x8] sm:$0xff]
  %v77 = vmul.f32 %v75, %v29
  %v78 = vmul.f32 %v76, %v30
  %s79 = scalar_lea.vmem %s0, 64
  %v80 = vld [vmem:[%s79] sm:$0xff]
  %v81 = vld [vmem:[%s79 + $0x8] sm:$0xff]
  %v82 = vmul.f32 %v80, %v32
  %v83 = vmul.f32 %v81, %v33
  %v84 = vadd.f32 %v77, %v82
  %v85 = vadd.f32 %v78, %v83
  %s86 = scalar_lea.vmem %s0, 80
  %v87 = vld [vmem:[%s86] sm:$0xff]
  %v88 = vld [vmem:[%s86 + $0x8] sm:$0xff]
  %v89 = vmul.f32 %v87, %v35
  %v90 = vmul.f32 %v88, %v36
  %v91 = vadd.f32 %v84, %v89
  %v92 = vadd.f32 %v85, %v90
  %v93 = vmul.f32 %v27, %v91
  %v94 = vmul.f32 %v28, %v92
  %v95 = vadd.f32 %v93, %v94
  %v96 = vrot.slane %v95, 4
  %v97 = vadd.f32 %v95, %v96
  %v98 = vrot.slane %v97, 2
  %v99 = vadd.f32 %v97, %v98
  %v100 = vrot.slane %v99, 1
  %v101 = vadd.f32 %v99, %v100
  %v102 = vld [vmem:[%s2 + $0x1] sm:$0x1]
  %v103 = vsub.f32 %v101, %v102
  %v104 = vand.u32 2147483647, %v103
  %vm105 = vcmp.le.f32.partialorder %v104, 0.005
  %v106 = vmul.f32 %v103, 0.5
  %v107 = vmul.f32 %v106, %v103
  %v108 = vsub.f32 %v104, 0.0025
  %v109 = vmul.f32 %v108, 0.005
  %v110 = vsel %vm105, %v107, %v109
  %v111 = vadd.f32 %v73, %v110
  %s112 = scalar_lea.vmem %s0, 96
  %v113 = vld [vmem:[%s112] sm:$0xff]
  %v114 = vld [vmem:[%s112 + $0x8] sm:$0xff]
  %v115 = vmul.f32 %v113, %v29
  %v116 = vmul.f32 %v114, %v30
  %s117 = scalar_lea.vmem %s0, 112
  %v118 = vld [vmem:[%s117] sm:$0xff]
  %v119 = vld [vmem:[%s117 + $0x8] sm:$0xff]
  %v120 = vmul.f32 %v118, %v32
  %v121 = vmul.f32 %v119, %v33
  %v122 = vadd.f32 %v115, %v120
  %v123 = vadd.f32 %v116, %v121
  %s124 = scalar_lea.vmem %s0, 128
  %v125 = vld [vmem:[%s124] sm:$0xff]
  %v126 = vld [vmem:[%s124 + $0x8] sm:$0xff]
  %v127 = vmul.f32 %v125, %v35
  %v128 = vmul.f32 %v126, %v36
  %v129 = vadd.f32 %v122, %v127
  %v130 = vadd.f32 %v123, %v128
  %v131 = vmul.f32 %v27, %v129
  %v132 = vmul.f32 %v28, %v130
  %v133 = vadd.f32 %v131, %v132
  %v134 = vrot.slane %v133, 4
  %v135 = vadd.f32 %v133, %v134
  %v136 = vrot.slane %v135, 2
  %v137 = vadd.f32 %v135, %v136
  %v138 = vrot.slane %v137, 1
  %v139 = vadd.f32 %v137, %v138
  %v140 = vld [vmem:[%s2 + $0x2] sm:$0x1]
  %v141 = vsub.f32 %v139, %v140
  %v142 = vand.u32 2147483647, %v141
  %vm143 = vcmp.le.f32.partialorder %v142, 0.005
  %v144 = vmul.f32 %v141, 0.5
  %v145 = vmul.f32 %v144, %v141
  %v146 = vsub.f32 %v142, 0.0025
  %v147 = vmul.f32 %v146, 0.005
  %v148 = vsel %vm143, %v145, %v147
  %v149 = vadd.f32 %v111, %v148
  %150 = vst [vmem:[%s3] sm:$0x1] %v149
  // Predicated region
  $region14: #{imu_loss.2} parent=0 // pred_check
    _
  $region15: #{imu_loss.2} parent=0 // pred_check_branch
    %152 = sbr.rel (0) target = $region17
  $region16: #{imu_loss.2} parent=0 // pred_region
    _
  $region17: #{imu_loss.2} parent=0 // pred_fallthru
    _
  // Predicated region
  $region18: #{imu_loss.2} parent=0 // pred_check
    _
  $region19: #{imu_loss.2} parent=0 // pred_check_branch
    %154 = sbr.rel (0) target = $region21
  $region20: #{imu_loss.2} parent=0 // pred_region
    _
  $region21: #{imu_loss.2} parent=0 // pred_fallthru
    _

// kernel: imu_loss.3
$region0: #{imu_loss.3}
  #allocation0 [shape = 'u32[]', space=smem, size = 0x4, offset = 0x4, fixed_abs, tag = 'smem constant byte address 0x4 - core index']
  #allocation1 [shape = 'u32[144,128]{1,0:T(1,128)}', space=vmem, size = 0x12000, scoped, tag = 'internal scratch']
  %s0 = inlined_call_operand.vmem [shape: f32[3,8,128], index: 0, kind: input, shape index: {}]
  %s1 = inlined_call_operand.vmem [shape: f32[2,8,128], index: 1, kind: input, shape index: {}]
  %s2 = inlined_call_operand.vmem [shape: f32[9,2,128], index: 2, kind: input, shape index: {}]
  %s3 = inlined_call_operand.vmem [shape: f32[9,2,128], index: 3, kind: output, shape index: {0}]
  %s4 = inlined_call_operand.vmem [shape: f32[9,128], index: 4, kind: output, shape index: {1}]
  %5 = xla_tuple %s3, %s4
  %s6 = sld [smem:[#allocation0]]
  $region30: #{imu_loss.3} parent=0
    _
  %s8 = ssub.s32 1, %s6
  %s9 = scalar_select 0, %s8, %s6
  // Predicated region
  $region2: #{imu_loss.3} parent=0 // pred_check
    _
  $region3: #{imu_loss.3} parent=0 // pred_check_branch
    %11 = sbr.rel (0) target = $region5
  $region4: #{imu_loss.3} parent=0 // pred_region
    _
  $region5: #{imu_loss.3} parent=0 // pred_fallthru
    _
  // Predicated region
  $region6: #{imu_loss.3} parent=0 // pred_check
    _
  $region7: #{imu_loss.3} parent=0 // pred_check_branch
    %13 = sbr.rel (0) target = $region9
  $region8: #{imu_loss.3} parent=0 // pred_region
    _
  $region9: #{imu_loss.3} parent=0 // pred_fallthru
    _
  // Predicated region
  $region10: #{imu_loss.3} parent=0 // pred_check
    _
  $region11: #{imu_loss.3} parent=0 // pred_check_branch
    %15 = sbr.rel (0) target = $region13
  $region12: #{imu_loss.3} parent=0 // pred_region
    _
  $region13: #{imu_loss.3} parent=0 // pred_fallthru
    _
  %v16 = vld [vmem:[%s0] sm:$0xff]
  %s17 = scalar_lea.vmem %s0, 8
  %v18 = vld [vmem:[%s17] sm:$0xff]
  %s19 = scalar_lea.vmem %s0, 16
  %v20 = vld [vmem:[%s19] sm:$0xff]
  %v21 = vld [vmem:[%s1] sm:$0xff]
  %s22 = scalar_lea.vmem %s1, 8
  %v23 = vld [vmem:[%s22] sm:$0xff]
  %v24 = vmul.f32 %v16, %v16
  %v25 = vmul.f32 %v18, %v18
  %v26 = vadd.f32 %v24, %v25
  %v27 = vmul.f32 %v20, %v20
  %v28 = vadd.f32 %v26, %v27
  %vm29 = vcmp.lt.f32.partialorder %v28, 1e-14
  %v30 = vsel %vm29, 1.0, %v28
  %v31 = vrsqrt.pop %v30
  %v32 = vmul.f32 %v16, %v31
  %v33 = vmul.f32 %v18, %v31
  %v34 = vmul.f32 %v20, %v31
  %v35 = vsub.f32 1.0, %v21
  %v36 = vmul.f32 %v35, %v32
  %v37 = vmul.f32 %v36, %v32
  %v38 = vadd.f32 %v21, %v37
  %v39 = vmul.f32 %v36, %v33
  %v40 = vmul.f32 %v23, %v34
  %v41 = vsub.f32 %v39, %v40
  %v42 = vmul.f32 %v36, %v34
  %v43 = vmul.f32 %v23, %v33
  %v44 = vadd.f32 %v42, %v43
  %v45 = vmul.f32 %v35, %v33
  %v46 = vmul.f32 %v45, %v32
  %v47 = vadd.f32 %v46, %v40
  %v48 = vmul.f32 %v45, %v33
  %v49 = vadd.f32 %v21, %v48
  %v50 = vmul.f32 %v45, %v34
  %v51 = vmul.f32 %v23, %v32
  %v52 = vsub.f32 %v50, %v51
  %v53 = vmul.f32 %v35, %v34
  %v54 = vmul.f32 %v53, %v32
  %v55 = vsub.f32 %v54, %v43
  %v56 = vmul.f32 %v53, %v33
  %v57 = vadd.f32 %v56, %v51
  %v58 = vmul.f32 %v53, %v34
  %v59 = vadd.f32 %v21, %v58
  %v60 = vsub.f32 0.0, %v20
  %v61 = vsub.f32 0.0, %v16
  %v62 = vsub.f32 0.0, %v18
  %v63 = vsel %vm29, 1.0, %v38
  %v64 = vsel %vm29, %v60, %v41
  %v65 = vsel %vm29, %v18, %v44
  %v66 = vsel %vm29, %v20, %v47
  %v67 = vsel %vm29, 1.0, %v49
  %v68 = vsel %vm29, %v61, %v52
  %v69 = vsel %vm29, %v62, %v55
  %v70 = vsel %vm29, %v16, %v57
  %v71 = vsel %vm29, 1.0, %v59
  %v73 = vrot.slane %v63, 4
  %v75 = vmul.f32 %v63, %v73
  %v77 = vrot.slane %v66, 4
  %v79 = vmul.f32 %v64, %v77
  %v80 = vadd.f32 %v75, %v79
  %v82 = vrot.slane %v69, 4
  %v84 = vmul.f32 %v65, %v82
  %v85 = vadd.f32 %v80, %v84
  %v87 = vrot.slane %v64, 4
  %v89 = vmul.f32 %v63, %v87
  %v91 = vrot.slane %v67, 4
  %v93 = vmul.f32 %v64, %v91
  %v94 = vadd.f32 %v89, %v93
  %v96 = vrot.slane %v70, 4
  %v98 = vmul.f32 %v65, %v96
  %v99 = vadd.f32 %v94, %v98
  %v101 = vrot.slane %v65, 4
  %v103 = vmul.f32 %v63, %v101
  %v105 = vrot.slane %v68, 4
  %v107 = vmul.f32 %v64, %v105
  %v108 = vadd.f32 %v103, %v107
  %v110 = vrot.slane %v71, 4
  %v112 = vmul.f32 %v65, %v110
  %v113 = vadd.f32 %v108, %v112
  %v114 = vmul.f32 %v66, %v73
  %v115 = vmul.f32 %v67, %v77
  %v116 = vadd.f32 %v114, %v115
  %v117 = vmul.f32 %v68, %v82
  %v118 = vadd.f32 %v116, %v117
  %v119 = vmul.f32 %v66, %v87
  %v120 = vmul.f32 %v67, %v91
  %v121 = vadd.f32 %v119, %v120
  %v122 = vmul.f32 %v68, %v96
  %v123 = vadd.f32 %v121, %v122
  %v124 = vmul.f32 %v66, %v101
  %v125 = vmul.f32 %v67, %v105
  %v126 = vadd.f32 %v124, %v125
  %v127 = vmul.f32 %v68, %v110
  %v128 = vadd.f32 %v126, %v127
  %v129 = vmul.f32 %v69, %v73
  %v130 = vmul.f32 %v70, %v77
  %v131 = vadd.f32 %v129, %v130
  %v132 = vmul.f32 %v71, %v82
  %v133 = vadd.f32 %v131, %v132
  %v134 = vmul.f32 %v69, %v87
  %v135 = vmul.f32 %v70, %v91
  %v136 = vadd.f32 %v134, %v135
  %v137 = vmul.f32 %v71, %v96
  %v138 = vadd.f32 %v136, %v137
  %v139 = vmul.f32 %v69, %v101
  %v140 = vmul.f32 %v70, %v105
  %v141 = vadd.f32 %v139, %v140
  %v142 = vmul.f32 %v71, %v110
  %v143 = vadd.f32 %v141, %v142
  %v145 = vrot.slane %v85, 2
  %v147 = vmul.f32 %v85, %v145
  %v149 = vrot.slane %v118, 2
  %v151 = vmul.f32 %v99, %v149
  %v152 = vadd.f32 %v147, %v151
  %v154 = vrot.slane %v133, 2
  %v156 = vmul.f32 %v113, %v154
  %v157 = vadd.f32 %v152, %v156
  %v159 = vrot.slane %v99, 2
  %v161 = vmul.f32 %v85, %v159
  %v163 = vrot.slane %v123, 2
  %v165 = vmul.f32 %v99, %v163
  %v166 = vadd.f32 %v161, %v165
  %v168 = vrot.slane %v138, 2
  %v170 = vmul.f32 %v113, %v168
  %v171 = vadd.f32 %v166, %v170
  %v173 = vrot.slane %v113, 2
  %v175 = vmul.f32 %v85, %v173
  %v177 = vrot.slane %v128, 2
  %v179 = vmul.f32 %v99, %v177
  %v180 = vadd.f32 %v175, %v179
  %v182 = vrot.slane %v143, 2
  %v184 = vmul.f32 %v113, %v182
  %v185 = vadd.f32 %v180, %v184
  %v186 = vmul.f32 %v118, %v145
  %v187 = vmul.f32 %v123, %v149
  %v188 = vadd.f32 %v186, %v187
  %v189 = vmul.f32 %v128, %v154
  %v190 = vadd.f32 %v188, %v189
  %v191 = vmul.f32 %v118, %v159
  %v192 = vmul.f32 %v123, %v163
  %v193 = vadd.f32 %v191, %v192
  %v194 = vmul.f32 %v128, %v168
  %v195 = vadd.f32 %v193, %v194
  %v196 = vmul.f32 %v118, %v173
  %v197 = vmul.f32 %v123, %v177
  %v198 = vadd.f32 %v196, %v197
  %v199 = vmul.f32 %v128, %v182
  %v200 = vadd.f32 %v198, %v199
  %v201 = vmul.f32 %v133, %v145
  %v202 = vmul.f32 %v138, %v149
  %v203 = vadd.f32 %v201, %v202
  %v204 = vmul.f32 %v143, %v154
  %v205 = vadd.f32 %v203, %v204
  %v206 = vmul.f32 %v133, %v159
  %v207 = vmul.f32 %v138, %v163
  %v208 = vadd.f32 %v206, %v207
  %v209 = vmul.f32 %v143, %v168
  %v210 = vadd.f32 %v208, %v209
  %v211 = vmul.f32 %v133, %v173
  %v212 = vmul.f32 %v138, %v177
  %v213 = vadd.f32 %v211, %v212
  %v214 = vmul.f32 %v143, %v182
  %v215 = vadd.f32 %v213, %v214
  %v216 = vld [vmem:[%s2] sm:$0x3]
  %s217 = scalar_lea.vmem %s2, 2
  %v218 = vld [vmem:[%s217] sm:$0x3]
  %s219 = scalar_lea.vmem %s2, 4
  %v220 = vld [vmem:[%s219] sm:$0x3]
  %s221 = scalar_lea.vmem %s2, 6
  %v222 = vld [vmem:[%s221] sm:$0x3]
  %s223 = scalar_lea.vmem %s2, 8
  %v224 = vld [vmem:[%s223] sm:$0x3]
  %s225 = scalar_lea.vmem %s2, 10
  %v226 = vld [vmem:[%s225] sm:$0x3]
  %s227 = scalar_lea.vmem %s2, 12
  %v228 = vld [vmem:[%s227] sm:$0x3]
  %s229 = scalar_lea.vmem %s2, 14
  %v230 = vld [vmem:[%s229] sm:$0x3]
  %s231 = scalar_lea.vmem %s2, 16
  %v232 = vld [vmem:[%s231] sm:$0x3]
  %v233 = vmul.f32 %v157, %v216
  %v234 = vmul.f32 %v190, %v222
  %v235 = vadd.f32 %v233, %v234
  %v236 = vmul.f32 %v205, %v228
  %v237 = vadd.f32 %v235, %v236
  %238 = vst [vmem:[%s3] sm:$0x3] %v237
  %v239 = vmul.f32 %v157, %v218
  %v240 = vmul.f32 %v190, %v224
  %v241 = vadd.f32 %v239, %v240
  %v242 = vmul.f32 %v205, %v230
  %v243 = vadd.f32 %v241, %v242
  %s244 = scalar_lea.vmem %s3, 2
  %245 = vst [vmem:[%s244] sm:$0x3] %v243
  %v246 = vmul.f32 %v157, %v220
  %v247 = vmul.f32 %v190, %v226
  %v248 = vadd.f32 %v246, %v247
  %v249 = vmul.f32 %v205, %v232
  %v250 = vadd.f32 %v248, %v249
  %s251 = scalar_lea.vmem %s3, 4
  %252 = vst [vmem:[%s251] sm:$0x3] %v250
  %v253 = vmul.f32 %v171, %v216
  %v254 = vmul.f32 %v195, %v222
  %v255 = vadd.f32 %v253, %v254
  %v256 = vmul.f32 %v210, %v228
  %v257 = vadd.f32 %v255, %v256
  %s258 = scalar_lea.vmem %s3, 6
  %259 = vst [vmem:[%s258] sm:$0x3] %v257
  %v260 = vmul.f32 %v171, %v218
  %v261 = vmul.f32 %v195, %v224
  %v262 = vadd.f32 %v260, %v261
  %v263 = vmul.f32 %v210, %v230
  %v264 = vadd.f32 %v262, %v263
  %s265 = scalar_lea.vmem %s3, 8
  %266 = vst [vmem:[%s265] sm:$0x3] %v264
  %v267 = vmul.f32 %v171, %v220
  %v268 = vmul.f32 %v195, %v226
  %v269 = vadd.f32 %v267, %v268
  %v270 = vmul.f32 %v210, %v232
  %v271 = vadd.f32 %v269, %v270
  %s272 = scalar_lea.vmem %s3, 10
  %273 = vst [vmem:[%s272] sm:$0x3] %v271
  %v274 = vmul.f32 %v185, %v216
  %v275 = vmul.f32 %v200, %v222
  %v276 = vadd.f32 %v274, %v275
  %v277 = vmul.f32 %v215, %v228
  %v278 = vadd.f32 %v276, %v277
  %s279 = scalar_lea.vmem %s3, 12
  %280 = vst [vmem:[%s279] sm:$0x3] %v278
  %v281 = vmul.f32 %v185, %v218
  %v282 = vmul.f32 %v200, %v224
  %v283 = vadd.f32 %v281, %v282
  %v284 = vmul.f32 %v215, %v230
  %v285 = vadd.f32 %v283, %v284
  %s286 = scalar_lea.vmem %s3, 14
  %287 = vst [vmem:[%s286] sm:$0x3] %v285
  %v288 = vmul.f32 %v185, %v220
  %v289 = vmul.f32 %v200, %v226
  %v290 = vadd.f32 %v288, %v289
  %v291 = vmul.f32 %v215, %v232
  %v292 = vadd.f32 %v290, %v291
  %s293 = scalar_lea.vmem %s3, 16
  %294 = vst [vmem:[%s293] sm:$0x3] %v292
  %v296 = vrot.slane %v157, 1
  %v298 = vmul.f32 %v157, %v296
  %v300 = vrot.slane %v190, 1
  %v302 = vmul.f32 %v171, %v300
  %v303 = vadd.f32 %v298, %v302
  %v305 = vrot.slane %v205, 1
  %v307 = vmul.f32 %v185, %v305
  %v308 = vadd.f32 %v303, %v307
  %v310 = vrot.slane %v171, 1
  %v312 = vmul.f32 %v157, %v310
  %v314 = vrot.slane %v195, 1
  %v316 = vmul.f32 %v171, %v314
  %v317 = vadd.f32 %v312, %v316
  %v319 = vrot.slane %v210, 1
  %v321 = vmul.f32 %v185, %v319
  %v322 = vadd.f32 %v317, %v321
  %v324 = vrot.slane %v185, 1
  %v326 = vmul.f32 %v157, %v324
  %v328 = vrot.slane %v200, 1
  %v330 = vmul.f32 %v171, %v328
  %v331 = vadd.f32 %v326, %v330
  %v333 = vrot.slane %v215, 1
  %v335 = vmul.f32 %v185, %v333
  %v336 = vadd.f32 %v331, %v335
  %v337 = vmul.f32 %v190, %v296
  %v338 = vmul.f32 %v195, %v300
  %v339 = vadd.f32 %v337, %v338
  %v340 = vmul.f32 %v200, %v305
  %v341 = vadd.f32 %v339, %v340
  %v342 = vmul.f32 %v190, %v310
  %v343 = vmul.f32 %v195, %v314
  %v344 = vadd.f32 %v342, %v343
  %v345 = vmul.f32 %v200, %v319
  %v346 = vadd.f32 %v344, %v345
  %v347 = vmul.f32 %v190, %v324
  %v348 = vmul.f32 %v195, %v328
  %v349 = vadd.f32 %v347, %v348
  %v350 = vmul.f32 %v200, %v333
  %v351 = vadd.f32 %v349, %v350
  %v352 = vmul.f32 %v205, %v296
  %v353 = vmul.f32 %v210, %v300
  %v354 = vadd.f32 %v352, %v353
  %v355 = vmul.f32 %v215, %v305
  %v356 = vadd.f32 %v354, %v355
  %v357 = vmul.f32 %v205, %v310
  %v358 = vmul.f32 %v210, %v314
  %v359 = vadd.f32 %v357, %v358
  %v360 = vmul.f32 %v215, %v319
  %v361 = vadd.f32 %v359, %v360
  %v362 = vmul.f32 %v205, %v324
  %v363 = vmul.f32 %v210, %v328
  %v364 = vadd.f32 %v362, %v363
  %v365 = vmul.f32 %v215, %v333
  %v366 = vadd.f32 %v364, %v365
  %v368 = vrot.slane %v216, 1
  %v370 = vmul.f32 %v216, %v368
  %v372 = vrot.slane %v222, 1
  %v374 = vmul.f32 %v218, %v372
  %v375 = vadd.f32 %v370, %v374
  %v377 = vrot.slane %v228, 1
  %v379 = vmul.f32 %v220, %v377
  %v380 = vadd.f32 %v375, %v379
  %v382 = vrot.slane %v218, 1
  %v384 = vmul.f32 %v216, %v382
  %v386 = vrot.slane %v224, 1
  %v388 = vmul.f32 %v218, %v386
  %v389 = vadd.f32 %v384, %v388
  %v391 = vrot.slane %v230, 1
  %v393 = vmul.f32 %v220, %v391
  %v394 = vadd.f32 %v389, %v393
  %v396 = vrot.slane %v220, 1
  %v398 = vmul.f32 %v216, %v396
  %v400 = vrot.slane %v226, 1
  %v402 = vmul.f32 %v218, %v400
  %v403 = vadd.f32 %v398, %v402
  %v405 = vrot.slane %v232, 1
  %v407 = vmul.f32 %v220, %v405
  %v408 = vadd.f32 %v403, %v407
  %v409 = vmul.f32 %v222, %v368
  %v410 = vmul.f32 %v224, %v372
  %v411 = vadd.f32 %v409, %v410
  %v412 = vmul.f32 %v226, %v377
  %v413 = vadd.f32 %v411, %v412
  %v414 = vmul.f32 %v222, %v382
  %v415 = vmul.f32 %v224, %v386
  %v416 = vadd.f32 %v414, %v415
  %v417 = vmul.f32 %v226, %v391
  %v418 = vadd.f32 %v416, %v417
  %v419 = vmul.f32 %v222, %v396
  %v420 = vmul.f32 %v224, %v400
  %v421 = vadd.f32 %v419, %v420
  %v422 = vmul.f32 %v226, %v405
  %v423 = vadd.f32 %v421, %v422
  %v424 = vmul.f32 %v228, %v368
  %v425 = vmul.f32 %v230, %v372
  %v426 = vadd.f32 %v424, %v425
  %v427 = vmul.f32 %v232, %v377
  %v428 = vadd.f32 %v426, %v427
  %v429 = vmul.f32 %v228, %v382
  %v430 = vmul.f32 %v230, %v386
  %v431 = vadd.f32 %v429, %v430
  %v432 = vmul.f32 %v232, %v391
  %v433 = vadd.f32 %v431, %v432
  %v434 = vmul.f32 %v228, %v396
  %v435 = vmul.f32 %v230, %v400
  %v436 = vadd.f32 %v434, %v435
  %v437 = vmul.f32 %v232, %v405
  %v438 = vadd.f32 %v436, %v437
  %v439 = vmul.f32 %v308, %v380
  %v440 = vmul.f32 %v341, %v413
  %v441 = vadd.f32 %v439, %v440
  %v442 = vmul.f32 %v356, %v428
  %v443 = vadd.f32 %v441, %v442
  %444 = vst [vmem:[%s4] sm:$0x1] %v443
  %v445 = vmul.f32 %v308, %v394
  %v446 = vmul.f32 %v341, %v418
  %v447 = vadd.f32 %v445, %v446
  %v448 = vmul.f32 %v356, %v433
  %v449 = vadd.f32 %v447, %v448
  %450 = vst [vmem:[%s4 + $0x1] sm:$0x1] %v449
  %v451 = vmul.f32 %v308, %v408
  %v452 = vmul.f32 %v341, %v423
  %v453 = vadd.f32 %v451, %v452
  %v454 = vmul.f32 %v356, %v438
  %v455 = vadd.f32 %v453, %v454
  %456 = vst [vmem:[%s4 + $0x2] sm:$0x1] %v455
  %v457 = vmul.f32 %v322, %v380
  %v458 = vmul.f32 %v346, %v413
  %v459 = vadd.f32 %v457, %v458
  %v460 = vmul.f32 %v361, %v428
  %v461 = vadd.f32 %v459, %v460
  %462 = vst [vmem:[%s4 + $0x3] sm:$0x1] %v461
  %v463 = vmul.f32 %v322, %v394
  %v464 = vmul.f32 %v346, %v418
  %v465 = vadd.f32 %v463, %v464
  %v466 = vmul.f32 %v361, %v433
  %v467 = vadd.f32 %v465, %v466
  %468 = vst [vmem:[%s4 + $0x4] sm:$0x1] %v467
  %v469 = vmul.f32 %v322, %v408
  %v470 = vmul.f32 %v346, %v423
  %v471 = vadd.f32 %v469, %v470
  %v472 = vmul.f32 %v361, %v438
  %v473 = vadd.f32 %v471, %v472
  %474 = vst [vmem:[%s4 + $0x5] sm:$0x1] %v473
  %v475 = vmul.f32 %v336, %v380
  %v476 = vmul.f32 %v351, %v413
  %v477 = vadd.f32 %v475, %v476
  %v478 = vmul.f32 %v366, %v428
  %v479 = vadd.f32 %v477, %v478
  %480 = vst [vmem:[%s4 + $0x6] sm:$0x1] %v479
  %v481 = vmul.f32 %v336, %v394
  %v482 = vmul.f32 %v351, %v418
  %v483 = vadd.f32 %v481, %v482
  %v484 = vmul.f32 %v366, %v433
  %v485 = vadd.f32 %v483, %v484
  %486 = vst [vmem:[%s4 + $0x7] sm:$0x1] %v485
  %v487 = vmul.f32 %v336, %v408
  %v488 = vmul.f32 %v351, %v423
  %v489 = vadd.f32 %v487, %v488
  %v490 = vmul.f32 %v366, %v438
  %v491 = vadd.f32 %v489, %v490
  %492 = vst [vmem:[%s4 + $0x8] sm:$0x1] %v491
  // Predicated region
  $region14: #{imu_loss.3} parent=0 // pred_check
    _
  $region15: #{imu_loss.3} parent=0 // pred_check_branch
    %494 = sbr.rel (0) target = $region17
  $region16: #{imu_loss.3} parent=0 // pred_region
    _
  $region17: #{imu_loss.3} parent=0 // pred_fallthru
    _
  // Predicated region
  $region18: #{imu_loss.3} parent=0 // pred_check
    _
  $region19: #{imu_loss.3} parent=0 // pred_check_branch
    %496 = sbr.rel (0) target = $region21
  $region20: #{imu_loss.3} parent=0 // pred_region
    _
  $region21: #{imu_loss.3} parent=0 // pred_fallthru
    _
  // Predicated region
  $region22: #{imu_loss.3} parent=0 // pred_check
    _
  $region23: #{imu_loss.3} parent=0 // pred_check_branch
    %498 = sbr.rel (0) target = $region25
  $region24: #{imu_loss.3} parent=0 // pred_region
    _
  $region25: #{imu_loss.3} parent=0 // pred_fallthru
    _
  // Predicated region
  $region26: #{imu_loss.3} parent=0 // pred_check
    _
  $region27: #{imu_loss.3} parent=0 // pred_check_branch
    %500 = sbr.rel (0) target = $region29
  $region28: #{imu_loss.3} parent=0 // pred_region
    _
  $region29: #{imu_loss.3} parent=0 // pred_fallthru
    _

</llo_original>
